<compile_context>
chip_gen: v7x
topology: tpu7x:2x2x1
jax: 0.10.0
libtpu: 0.0.40
codegen_flags: <defaults>
</compile_context>

<pallas_src>
import jax
import jax.numpy as jnp
from jax.experimental import pallas as pl
from jax.experimental.pallas import tpu as pltpu


# Set to jnp.float32 for bit-tight (2e-5) agreement with the f32 reference;
# bfloat16 is the fast MXU path recommended by the perf review.
MXU_DTYPE = jnp.bfloat16


def _round_up(n, m):
    return ((n + m - 1) // m) * m


# ---------------------------------------------------------------------------
# Weight packing: all LSTM + FC parameters -> one (R, 8H) f32 slab.
#   rows [rec  + l*H : rec + (l+1)*H)  : [whh_l | wih_{l+1}]   (wih zeros for last layer)
#   rows [wih0 : wih0 + D_in)          : wih_0            (lanes 0:4H)
#   rows [bias + l]                    : b_ih_l + b_hh_l  (lanes 0:4H)
#   rows [wfc  : wfc + H)              : fc.weight.T      (lanes 0:O, rest zero)
#   row  [bfc]                         : fc.bias          (lanes 0:O)
# The g-gate columns (2H:3H) of every LSTM weight/bias are pre-scaled by 2 so
# the kernel can use the tanh(x) = 2*sigmoid(2x) - 1 identity with a single
# full-width sigmoid.
# ---------------------------------------------------------------------------
def pack_params(params, input_dim, hidden_dim, output_dim):
    H, G = hidden_dim, 4 * hidden_dim
    L = len(params["lstm"])
    assert H % 8 == 0, "packing assumes hidden_dim is a multiple of 8"

    offs, r = {}, 0
    offs["rec"] = r;  r += _round_up(L * H, 8)
    offs["wih0"] = r; r += _round_up(input_dim, 8)
    offs["bias"] = r; r += _round_up(L, 8)
    offs["wfc"] = r;  r += _round_up(H, 8)
    offs["bfc"] = r;  r += _round_up(1, 8)
    R = _round_up(r, 8)

    gscale = jnp.ones((G,), jnp.float32).at[2 * H:3 * H].set(2.0)

    slab = jnp.zeros((R, 2 * G), jnp.float32)
    for l in range(L):
        r0 = offs["rec"] + l * H
        slab = slab.at[r0:r0 + H, 0:G].set(params["lstm"][l]["whh_t"] * gscale)
        if l + 1 < L:
            slab = slab.at[r0:r0 + H, G:2 * G].set(
                params["lstm"][l + 1]["wih_t"] * gscale)
        slab = slab.at[offs["bias"] + l, 0:G].set(
            params["lstm"][l]["b"].reshape(G) * gscale)
    slab = slab.at[offs["wih0"]:offs["wih0"] + input_dim, 0:G].set(
        params["lstm"][0]["wih_t"] * gscale)
    slab = slab.at[offs["wfc"]:offs["wfc"] + H, 0:output_dim].set(
        params["fc"]["w_t"])
    slab = slab.at[offs["bfc"], 0:output_dim].set(
        params["fc"]["b"].reshape(output_dim))
    return slab, offs


# ---------------------------------------------------------------------------
# Fused Pallas kernel: all LSTM layers (wavefront) + FC head in one invocation
# ---------------------------------------------------------------------------
def _make_fused_lstm_fc_kernel(B, T, D_in, H, L, O, offs, mxu_dtype):
    G = 4 * H
    f32 = jnp.float32

    def kernel(x_ref, slab_ref, o_ref):
        # ---- weights: loaded once from the packed slab (static slices) ----
        fused = []
        for l in range(L):
            r0 = offs["rec"] + l * H
            if l + 1 < L:
                fused.append(slab_ref[r0:r0 + H, :].astype(mxu_dtype))        # (H, 2G)
            else:
                fused.append(slab_ref[r0:r0 + H, 0:G].astype(mxu_dtype))      # (H, G)
        wih0 = slab_ref[offs["wih0"]:offs["wih0"] + D_in, 0:G].astype(mxu_dtype)
        b = [slab_ref[offs["bias"] + l:offs["bias"] + l + 1, 0:G]             # (1, G) f32
             for l in range(L)]
        wfc = slab_ref[offs["wfc"]:offs["wfc"] + H, 0:G].astype(mxu_dtype)    # (H, G) zero-padded
        bfc = slab_ref[offs["bfc"]:offs["bfc"] + 1, 0:G]                      # (1, G) f32

        # ---- hoisted layer-0 input projection for all timesteps ----------
        x3 = x_ref[...]                                           # (B, T, D_in)
        x_tm = jnp.concatenate([x3[:, t, :] for t in range(T)], axis=0)  # (T*B, D_in)
        xw0 = jnp.dot(x_tm.astype(mxu_dtype), wih0,
                      preferred_element_type=f32) + b[0]          # (T*B, G)

        # ---- wavefront recurrence over time, layers inner -----------------
        h = [jnp.zeros((B, H), f32) for _ in range(L)]
        c = [jnp.zeros((B, H), f32) for _ in range(L)]
        rec = [jnp.zeros((B, G), f32) for _ in range(L)]   # h_{t-1} @ whh_l
        xin = [None] * L                                   # layer-l input proj at step t

        for t in range(T):
            for l in range(L):
                if l == 0:
                    pre = xw0[t * B:(t + 1) * B, :] + rec[0]       # bias folded into xw0
                else:
                    pre = xin[l] + b[l] + rec[l]
                # One sigmoid over the full 4H-lane tile; g columns were
                # pre-scaled by 2 so tanh(g) = 2*sigmoid(2g) - 1.
                s = jax.nn.sigmoid(pre)
                i_g = s[:, 0 * H:1 * H]
                f_g = s[:, 1 * H:2 * H]
                g_g = 2.0 * s[:, 2 * H:3 * H] - 1.0
                o_g = s[:, 3 * H:4 * H]
                c[l] = f_g * c[l] + i_g * g_g
                h[l] = o_g * jnp.tanh(c[l])

                # Fused MXU push: [whh_l | wih_{l+1}] -> next-step recurrent
                # gates for layer l AND current-step input proj for layer l+1.
                if l + 1 < L:
                    z = jnp.dot(h[l].astype(mxu_dtype), fused[l],
                                preferred_element_type=f32)        # (B, 2G)
                    xin[l + 1] = z[:, G:2 * G]
                    if t + 1 < T:
                        rec[l] = z[:, 0:G]
                elif t + 1 < T:
                    rec[l] = jnp.dot(h[l].astype(mxu_dtype), fused[l],
                                     preferred_element_type=f32)   # (B, G)

        # ---- FC head on the last timestep of the last layer ---------------
        out_full = jnp.dot(h[L - 1].astype(mxu_dtype), wfc,
                           preferred_element_type=f32) + bfc       # (B, G), lanes O: are 0
        o_ref[...] = out_full[:, 0:O].astype(o_ref.dtype)

    return kernel


def _vmem_spec():
    return pl.BlockSpec(memory_space=pltpu.MemorySpace.VMEM)


# ---------------------------------------------------------------------------
# Wrapper: single pallas_call, two inputs (x, packed weight slab)
# ---------------------------------------------------------------------------
def lstm_forward(x, slab, offs, hidden_dim, num_layers, output_dim,
                 mxu_dtype=MXU_DTYPE):
    """x: (B, T, input_dim) batch-first. Returns (B, output_dim)."""
    B, T, D_in = x.shape
    kernel = _make_fused_lstm_fc_kernel(B, T, D_in, hidden_dim, num_layers,
                                        output_dim, offs, mxu_dtype)
    return pl.pallas_call(
        kernel,
        out_shape=jax.ShapeDtypeStruct((B, output_dim), jnp.float32),
        in_specs=[_vmem_spec(), _vmem_spec()],
        out_specs=_vmem_spec(),
    )(x, slab)


# ---------------------------------------------------------------------------
# Deterministic parameter init (PyTorch-style uniform(-1/sqrt(H), 1/sqrt(H)))
# ---------------------------------------------------------------------------
def init_params(key, input_dim, hidden_dim, num_layers, output_dim):
    k = 1.0 / jnp.sqrt(hidden_dim)
    params = {"lstm": []}
    for layer in range(num_layers):
        d_in = input_dim if layer == 0 else hidden_dim
        key, k1, k2, k3, k4 = jax.random.split(key, 5)
        w_ih = jax.random.uniform(k1, (4 * hidden_dim, d_in), jnp.float32, -k, k)
        w_hh = jax.random.uniform(k2, (4 * hidden_dim, hidden_dim), jnp.float32, -k, k)
        b_ih = jax.random.uniform(k3, (4 * hidden_dim,), jnp.float32, -k, k)
        b_hh = jax.random.uniform(k4, (4 * hidden_dim,), jnp.float32, -k, k)
        params["lstm"].append({
            "wih_t": w_ih.T,                              # (D_in, 4H)  gate order i,f,g,o
            "whh_t": w_hh.T,                              # (H, 4H)
            "b": (b_ih + b_hh).reshape(1, 4 * hidden_dim),
        })
    key, k5, k6 = jax.random.split(key, 3)
    w_fc = jax.random.uniform(k5, (output_dim, hidden_dim), jnp.float32, -k, k)
    b_fc = jax.random.uniform(k6, (output_dim,), jnp.float32, -k, k)
    params["fc"] = {"w_t": w_fc.T, "b": b_fc.reshape(1, output_dim)}
    return params


# ---------------------------------------------------------------------------
# Pure-JAX f32 reference (exact PyTorch forward semantics) for the check
# ---------------------------------------------------------------------------
def lstm_reference(x, params, hidden_dim):
    B, T, _ = x.shape
    seq = x.astype(jnp.float32)
    for layer in params["lstm"]:
        h = jnp.zeros((B, hidden_dim), jnp.float32)
        c = jnp.zeros((B, hidden_dim), jnp.float32)
        outs = []
        for t in range(T):
            gates = seq[:, t, :] @ layer["wih_t"] + h @ layer["whh_t"] + layer["b"]
            i_g = jax.nn.sigmoid(gates[:, 0 * hidden_dim:1 * hidden_dim])
            f_g = jax.nn.sigmoid(gates[:, 1 * hidden_dim:2 * hidden_dim])
            g_g = jnp.tanh(gates[:, 2 * hidden_dim:3 * hidden_dim])
            o_g = jax.nn.sigmoid(gates[:, 3 * hidden_dim:4 * hidden_dim])
            c = f_g * c + i_g * g_g
            h = o_g * jnp.tanh(c)
            outs.append(h)
        seq = jnp.stack(outs, axis=1)
    return seq[:, -1, :] @ params["fc"]["w_t"] + params["fc"]["b"]


if __name__ == "__main__":
    # Small shapes implied by the module: x (batch, seq, input_dim)
    batch, seq_len, input_dim = 2, 8, 4
    hidden_dim, num_layers, output_dim = 32, 2, 1

    key = jax.random.PRNGKey(0)
    key, kx = jax.random.split(key)
    x = jax.random.normal(kx, (batch, seq_len, input_dim), jnp.float32)

    params = init_params(key, input_dim, hidden_dim, num_layers, output_dim)
    slab, offs = pack_params(params, input_dim, hidden_dim, output_dim)

    out = lstm_forward(x, slab, offs, hidden_dim, num_layers, output_dim)
    out = jax.block_until_ready(out)

    ref = lstm_reference(x, params, hidden_dim)
    assert out.shape == (batch, output_dim), out.shape
    # bf16 MXU operands (f32 accumulate / f32 gate math) need a looser check
    # than the bit-tight f32 path (see perf review correctness note).
    tol = 2e-5 if MXU_DTYPE == jnp.float32 else 5e-2
    assert jnp.allclose(out, ref, atol=tol, rtol=tol), (out, ref)

    print("KERNEL_OK")
</pallas_src>

<mosaic_0001>
module attributes {stable_mosaic.version = 11 : i64} {
  func.func @kernel(%arg0: memref<2x8x4xf32, #tpu.memory_space<vmem>>, %arg1: memref<120x256xf32, #tpu.memory_space<vmem>>, %arg2: memref<2x1xf32, #tpu.memory_space<vmem>>) attributes {dimension_semantics = [], scalar_prefetch = 0 : i64, scratch_operands = 0 : i64, tpu.core_type = #tpu.core_type<tc>} {
    %c0 = arith.constant 0 : index
    %c0_0 = arith.constant 0 : index
    %0 = vector.load %arg1[%c0, %c0_0] : memref<120x256xf32, #tpu.memory_space<vmem>>, vector<32x256xf32>
    %1 = arith.truncf %0 : vector<32x256xf32> to vector<32x256xbf16>
    %c32 = arith.constant 32 : index
    %c0_1 = arith.constant 0 : index
    %2 = vector.load %arg1[%c32, %c0_1] : memref<120x256xf32, #tpu.memory_space<vmem>>, vector<32x128xf32>
    %3 = arith.truncf %2 : vector<32x128xf32> to vector<32x128xbf16>
    %c64 = arith.constant 64 : index
    %c0_2 = arith.constant 0 : index
    %4 = vector.load %arg1[%c64, %c0_2] : memref<120x256xf32, #tpu.memory_space<vmem>>, vector<4x128xf32>
    %5 = arith.truncf %4 : vector<4x128xf32> to vector<4x128xbf16>
    %c72 = arith.constant 72 : index
    %c0_3 = arith.constant 0 : index
    %6 = vector.load %arg1[%c72, %c0_3] : memref<120x256xf32, #tpu.memory_space<vmem>>, vector<1x128xf32>
    %c73 = arith.constant 73 : index
    %c0_4 = arith.constant 0 : index
    %7 = vector.load %arg1[%c73, %c0_4] : memref<120x256xf32, #tpu.memory_space<vmem>>, vector<1x128xf32>
    %c80 = arith.constant 80 : index
    %c0_5 = arith.constant 0 : index
    %8 = vector.load %arg1[%c80, %c0_5] : memref<120x256xf32, #tpu.memory_space<vmem>>, vector<32x128xf32>
    %9 = arith.truncf %8 : vector<32x128xf32> to vector<32x128xbf16>
    %c112 = arith.constant 112 : index
    %c0_6 = arith.constant 0 : index
    %10 = vector.load %arg1[%c112, %c0_6] : memref<120x256xf32, #tpu.memory_space<vmem>>, vector<1x128xf32>
    %c0_7 = arith.constant 0 : index
    %c0_8 = arith.constant 0 : index
    %c0_9 = arith.constant 0 : index
    %11 = vector.load %arg0[%c0_7, %c0_8, %c0_9] : memref<2x8x4xf32, #tpu.memory_space<vmem>>, vector<2x8x4xf32>
    %12 = vector.extract_strided_slice %11 {offsets = [0, 0, 0], sizes = [2, 1, 4], strides = [1, 1, 1]} : vector<2x8x4xf32> to vector<2x1x4xf32>
    %13 = vector.shape_cast %12 : vector<2x1x4xf32> to vector<2x4xf32>
    %14 = vector.extract_strided_slice %11 {offsets = [0, 1, 0], sizes = [2, 1, 4], strides = [1, 1, 1]} : vector<2x8x4xf32> to vector<2x1x4xf32>
    %15 = vector.shape_cast %14 : vector<2x1x4xf32> to vector<2x4xf32>
    %16 = vector.extract_strided_slice %11 {offsets = [0, 2, 0], sizes = [2, 1, 4], strides = [1, 1, 1]} : vector<2x8x4xf32> to vector<2x1x4xf32>
    %17 = vector.shape_cast %16 : vector<2x1x4xf32> to vector<2x4xf32>
    %18 = vector.extract_strided_slice %11 {offsets = [0, 3, 0], sizes = [2, 1, 4], strides = [1, 1, 1]} : vector<2x8x4xf32> to vector<2x1x4xf32>
    %19 = vector.shape_cast %18 : vector<2x1x4xf32> to vector<2x4xf32>
    %20 = vector.extract_strided_slice %11 {offsets = [0, 4, 0], sizes = [2, 1, 4], strides = [1, 1, 1]} : vector<2x8x4xf32> to vector<2x1x4xf32>
    %21 = vector.shape_cast %20 : vector<2x1x4xf32> to vector<2x4xf32>
    %22 = vector.extract_strided_slice %11 {offsets = [0, 5, 0], sizes = [2, 1, 4], strides = [1, 1, 1]} : vector<2x8x4xf32> to vector<2x1x4xf32>
    %23 = vector.shape_cast %22 : vector<2x1x4xf32> to vector<2x4xf32>
    %24 = vector.extract_strided_slice %11 {offsets = [0, 6, 0], sizes = [2, 1, 4], strides = [1, 1, 1]} : vector<2x8x4xf32> to vector<2x1x4xf32>
    %25 = vector.shape_cast %24 : vector<2x1x4xf32> to vector<2x4xf32>
    %26 = vector.extract_strided_slice %11 {offsets = [0, 7, 0], sizes = [2, 1, 4], strides = [1, 1, 1]} : vector<2x8x4xf32> to vector<2x1x4xf32>
    %27 = vector.shape_cast %26 : vector<2x1x4xf32> to vector<2x4xf32>
    %28 = tpu.concatenate %13, %15, %17, %19, %21, %23, %25, %27 in 0 : vector<2x4xf32>, vector<2x4xf32>, vector<2x4xf32>, vector<2x4xf32>, vector<2x4xf32>, vector<2x4xf32>, vector<2x4xf32>, vector<2x4xf32> -> vector<16x4xf32>
    %29 = arith.truncf %28 : vector<16x4xf32> to vector<16x4xbf16>
    %cst = arith.constant dense<0.000000e+00> : vector<16x128xf32>
    %30 = tpu.matmul %29, %5, %cst {dimension_numbers = #tpu.dot_dimension_numbers<[1], [0], [0], [1], [0, 0, 1, 1], [], []>} : vector<16x4xbf16>, vector<4x128xbf16>, vector<16x128xf32> -> vector<16x128xf32>
    %31 = vector.broadcast %6 : vector<1x128xf32> to vector<16x128xf32>
    %32 = arith.addf %30, %31 : vector<16x128xf32>
    %cst_10 = arith.constant 0.000000e+00 : f32
    %33 = vector.broadcast %cst_10 : f32 to vector<2x32xf32>
    %cst_11 = arith.constant 0.000000e+00 : f32
    %34 = vector.broadcast %cst_11 : f32 to vector<2x32xf32>
    %cst_12 = arith.constant 0.000000e+00 : f32
    %35 = vector.broadcast %cst_12 : f32 to vector<2x128xf32>
    %cst_13 = arith.constant 0.000000e+00 : f32
    %36 = vector.broadcast %cst_13 : f32 to vector<2x128xf32>
    %37 = vector.extract_strided_slice %32 {offsets = [0, 0], sizes = [2, 128], strides = [1, 1]} : vector<16x128xf32> to vector<2x128xf32>
    %38 = arith.addf %37, %35 : vector<2x128xf32>
    %39 = arith.negf %38 : vector<2x128xf32>
    %40 = math.exp %39 : vector<2x128xf32>
    %cst_14 = arith.constant 1.000000e+00 : f32
    %41 = vector.broadcast %cst_14 : f32 to vector<2x128xf32>
    %42 = arith.addf %41, %40 : vector<2x128xf32>
    %43 = arith.divf %41, %42 : vector<2x128xf32>
    %44 = vector.extract_strided_slice %43 {offsets = [0, 0], sizes = [2, 32], strides = [1, 1]} : vector<2x128xf32> to vector<2x32xf32>
    %45 = vector.extract_strided_slice %43 {offsets = [0, 32], sizes = [2, 32], strides = [1, 1]} : vector<2x128xf32> to vector<2x32xf32>
    %46 = vector.extract_strided_slice %43 {offsets = [0, 64], sizes = [2, 32], strides = [1, 1]} : vector<2x128xf32> to vector<2x32xf32>
    %cst_15 = arith.constant 2.000000e+00 : f32
    %47 = vector.broadcast %cst_15 : f32 to vector<2x32xf32>
    %48 = arith.mulf %47, %46 : vector<2x32xf32>
    %cst_16 = arith.constant 1.000000e+00 : f32
    %49 = vector.broadcast %cst_16 : f32 to vector<2x32xf32>
    %50 = arith.subf %48, %49 : vector<2x32xf32>
    %51 = vector.extract_strided_slice %43 {offsets = [0, 96], sizes = [2, 32], strides = [1, 1]} : vector<2x128xf32> to vector<2x32xf32>
    %52 = arith.mulf %45, %33 : vector<2x32xf32>
    %53 = arith.mulf %44, %50 : vector<2x32xf32>
    %54 = arith.addf %52, %53 : vector<2x32xf32>
    %55 = math.tanh %54 : vector<2x32xf32>
    %56 = arith.mulf %51, %55 : vector<2x32xf32>
    %57 = arith.truncf %56 : vector<2x32xf32> to vector<2x32xbf16>
    %cst_17 = arith.constant dense<0.000000e+00> : vector<2x256xf32>
    %58 = tpu.matmul %57, %1, %cst_17 {dimension_numbers = #tpu.dot_dimension_numbers<[1], [0], [0], [1], [0, 0, 1, 1], [], []>} : vector<2x32xbf16>, vector<32x256xbf16>, vector<2x256xf32> -> vector<2x256xf32>
    %59 = vector.extract_strided_slice %58 {offsets = [0, 128], sizes = [2, 128], strides = [1, 1]} : vector<2x256xf32> to vector<2x128xf32>
    %60 = vector.extract_strided_slice %58 {offsets = [0, 0], sizes = [2, 128], strides = [1, 1]} : vector<2x256xf32> to vector<2x128xf32>
    %61 = vector.broadcast %7 : vector<1x128xf32> to vector<2x128xf32>
    %62 = arith.addf %59, %61 : vector<2x128xf32>
    %63 = arith.addf %62, %36 : vector<2x128xf32>
    %64 = arith.negf %63 : vector<2x128xf32>
    %65 = math.exp %64 : vector<2x128xf32>
    %cst_18 = arith.constant 1.000000e+00 : f32
    %66 = vector.broadcast %cst_18 : f32 to vector<2x128xf32>
    %67 = arith.addf %66, %65 : vector<2x128xf32>
    %68 = arith.divf %66, %67 : vector<2x128xf32>
    %69 = vector.extract_strided_slice %68 {offsets = [0, 0], sizes = [2, 32], strides = [1, 1]} : vector<2x128xf32> to vector<2x32xf32>
    %70 = vector.extract_strided_slice %68 {offsets = [0, 32], sizes = [2, 32], strides = [1, 1]} : vector<2x128xf32> to vector<2x32xf32>
    %71 = vector.extract_strided_slice %68 {offsets = [0, 64], sizes = [2, 32], strides = [1, 1]} : vector<2x128xf32> to vector<2x32xf32>
    %cst_19 = arith.constant 2.000000e+00 : f32
    %72 = vector.broadcast %cst_19 : f32 to vector<2x32xf32>
    %73 = arith.mulf %72, %71 : vector<2x32xf32>
    %cst_20 = arith.constant 1.000000e+00 : f32
    %74 = vector.broadcast %cst_20 : f32 to vector<2x32xf32>
    %75 = arith.subf %73, %74 : vector<2x32xf32>
    %76 = vector.extract_strided_slice %68 {offsets = [0, 96], sizes = [2, 32], strides = [1, 1]} : vector<2x128xf32> to vector<2x32xf32>
    %77 = arith.mulf %70, %34 : vector<2x32xf32>
    %78 = arith.mulf %69, %75 : vector<2x32xf32>
    %79 = arith.addf %77, %78 : vector<2x32xf32>
    %80 = math.tanh %79 : vector<2x32xf32>
    %81 = arith.mulf %76, %80 : vector<2x32xf32>
    %82 = arith.truncf %81 : vector<2x32xf32> to vector<2x32xbf16>
    %cst_21 = arith.constant dense<0.000000e+00> : vector<2x128xf32>
    %83 = tpu.matmul %82, %3, %cst_21 {dimension_numbers = #tpu.dot_dimension_numbers<[1], [0], [0], [1], [0, 0, 1, 1], [], []>} : vector<2x32xbf16>, vector<32x128xbf16>, vector<2x128xf32> -> vector<2x128xf32>
    %84 = vector.extract_strided_slice %32 {offsets = [2, 0], sizes = [2, 128], strides = [1, 1]} : vector<16x128xf32> to vector<2x128xf32>
    %85 = arith.addf %84, %60 : vector<2x128xf32>
    %86 = arith.negf %85 : vector<2x128xf32>
    %87 = math.exp %86 : vector<2x128xf32>
    %cst_22 = arith.constant 1.000000e+00 : f32
    %88 = vector.broadcast %cst_22 : f32 to vector<2x128xf32>
    %89 = arith.addf %88, %87 : vector<2x128xf32>
    %90 = arith.divf %88, %89 : vector<2x128xf32>
    %91 = vector.extract_strided_slice %90 {offsets = [0, 0], sizes = [2, 32], strides = [1, 1]} : vector<2x128xf32> to vector<2x32xf32>
    %92 = vector.extract_strided_slice %90 {offsets = [0, 32], sizes = [2, 32], strides = [1, 1]} : vector<2x128xf32> to vector<2x32xf32>
    %93 = vector.extract_strided_slice %90 {offsets = [0, 64], sizes = [2, 32], strides = [1, 1]} : vector<2x128xf32> to vector<2x32xf32>
    %cst_23 = arith.constant 2.000000e+00 : f32
    %94 = vector.broadcast %cst_23 : f32 to vector<2x32xf32>
    %95 = arith.mulf %94, %93 : vector<2x32xf32>
    %cst_24 = arith.constant 1.000000e+00 : f32
    %96 = vector.broadcast %cst_24 : f32 to vector<2x32xf32>
    %97 = arith.subf %95, %96 : vector<2x32xf32>
    %98 = vector.extract_strided_slice %90 {offsets = [0, 96], sizes = [2, 32], strides = [1, 1]} : vector<2x128xf32> to vector<2x32xf32>
    %99 = arith.mulf %92, %54 : vector<2x32xf32>
    %100 = arith.mulf %91, %97 : vector<2x32xf32>
    %101 = arith.addf %99, %100 : vector<2x32xf32>
    %102 = math.tanh %101 : vector<2x32xf32>
    %103 = arith.mulf %98, %102 : vector<2x32xf32>
    %104 = arith.truncf %103 : vector<2x32xf32> to vector<2x32xbf16>
    %cst_25 = arith.constant dense<0.000000e+00> : vector<2x256xf32>
    %105 = tpu.matmul %104, %1, %cst_25 {dimension_numbers = #tpu.dot_dimension_numbers<[1], [0], [0], [1], [0, 0, 1, 1], [], []>} : vector<2x32xbf16>, vector<32x256xbf16>, vector<2x256xf32> -> vector<2x256xf32>
    %106 = vector.extract_strided_slice %105 {offsets = [0, 128], sizes = [2, 128], strides = [1, 1]} : vector<2x256xf32> to vector<2x128xf32>
    %107 = vector.extract_strided_slice %105 {offsets = [0, 0], sizes = [2, 128], strides = [1, 1]} : vector<2x256xf32> to vector<2x128xf32>
    %108 = vector.broadcast %7 : vector<1x128xf32> to vector<2x128xf32>
    %109 = arith.addf %106, %108 : vector<2x128xf32>
    %110 = arith.addf %109, %83 : vector<2x128xf32>
    %111 = arith.negf %110 : vector<2x128xf32>
    %112 = math.exp %111 : vector<2x128xf32>
    %cst_26 = arith.constant 1.000000e+00 : f32
    %113 = vector.broadcast %cst_26 : f32 to vector<2x128xf32>
    %114 = arith.addf %113, %112 : vector<2x128xf32>
    %115 = arith.divf %113, %114 : vector<2x128xf32>
    %116 = vector.extract_strided_slice %115 {offsets = [0, 0], sizes = [2, 32], strides = [1, 1]} : vector<2x128xf32> to vector<2x32xf32>
    %117 = vector.extract_strided_slice %115 {offsets = [0, 32], sizes = [2, 32], strides = [1, 1]} : vector<2x128xf32> to vector<2x32xf32>
    %118 = vector.extract_strided_slice %115 {offsets = [0, 64], sizes = [2, 32], strides = [1, 1]} : vector<2x128xf32> to vector<2x32xf32>
    %cst_27 = arith.constant 2.000000e+00 : f32
    %119 = vector.broadcast %cst_27 : f32 to vector<2x32xf32>
    %120 = arith.mulf %119, %118 : vector<2x32xf32>
    %cst_28 = arith.constant 1.000000e+00 : f32
    %121 = vector.broadcast %cst_28 : f32 to vector<2x32xf32>
    %122 = arith.subf %120, %121 : vector<2x32xf32>
    %123 = vector.extract_strided_slice %115 {offsets = [0, 96], sizes = [2, 32], strides = [1, 1]} : vector<2x128xf32> to vector<2x32xf32>
    %124 = arith.mulf %117, %79 : vector<2x32xf32>
    %125 = arith.mulf %116, %122 : vector<2x32xf32>
    %126 = arith.addf %124, %125 : vector<2x32xf32>
    %127 = math.tanh %126 : vector<2x32xf32>
    %128 = arith.mulf %123, %127 : vector<2x32xf32>
    %129 = arith.truncf %128 : vector<2x32xf32> to vector<2x32xbf16>
    %cst_29 = arith.constant dense<0.000000e+00> : vector<2x128xf32>
    %130 = tpu.matmul %129, %3, %cst_29 {dimension_numbers = #tpu.dot_dimension_numbers<[1], [0], [0], [1], [0, 0, 1, 1], [], []>} : vector<2x32xbf16>, vector<32x128xbf16>, vector<2x128xf32> -> vector<2x128xf32>
    %131 = vector.extract_strided_slice %32 {offsets = [4, 0], sizes = [2, 128], strides = [1, 1]} : vector<16x128xf32> to vector<2x128xf32>
    %132 = arith.addf %131, %107 : vector<2x128xf32>
    %133 = arith.negf %132 : vector<2x128xf32>
    %134 = math.exp %133 : vector<2x128xf32>
    %cst_30 = arith.constant 1.000000e+00 : f32
    %135 = vector.broadcast %cst_30 : f32 to vector<2x128xf32>
    %136 = arith.addf %135, %134 : vector<2x128xf32>
    %137 = arith.divf %135, %136 : vector<2x128xf32>
    %138 = vector.extract_strided_slice %137 {offsets = [0, 0], sizes = [2, 32], strides = [1, 1]} : vector<2x128xf32> to vector<2x32xf32>
    %139 = vector.extract_strided_slice %137 {offsets = [0, 32], sizes = [2, 32], strides = [1, 1]} : vector<2x128xf32> to vector<2x32xf32>
    %140 = vector.extract_strided_slice %137 {offsets = [0, 64], sizes = [2, 32], strides = [1, 1]} : vector<2x128xf32> to vector<2x32xf32>
    %cst_31 = arith.constant 2.000000e+00 : f32
    %141 = vector.broadcast %cst_31 : f32 to vector<2x32xf32>
    %142 = arith.mulf %141, %140 : vector<2x32xf32>
    %cst_32 = arith.constant 1.000000e+00 : f32
    %143 = vector.broadcast %cst_32 : f32 to vector<2x32xf32>
    %144 = arith.subf %142, %143 : vector<2x32xf32>
    %145 = vector.extract_strided_slice %137 {offsets = [0, 96], sizes = [2, 32], strides = [1, 1]} : vector<2x128xf32> to vector<2x32xf32>
    %146 = arith.mulf %139, %101 : vector<2x32xf32>
    %147 = arith.mulf %138, %144 : vector<2x32xf32>
    %148 = arith.addf %146, %147 : vector<2x32xf32>
    %149 = math.tanh %148 : vector<2x32xf32>
    %150 = arith.mulf %145, %149 : vector<2x32xf32>
    %151 = arith.truncf %150 : vector<2x32xf32> to vector<2x32xbf16>
    %cst_33 = arith.constant dense<0.000000e+00> : vector<2x256xf32>
    %152 = tpu.matmul %151, %1, %cst_33 {dimension_numbers = #tpu.dot_dimension_numbers<[1], [0], [0], [1], [0, 0, 1, 1], [], []>} : vector<2x32xbf16>, vector<32x256xbf16>, vector<2x256xf32> -> vector<2x256xf32>
    %153 = vector.extract_strided_slice %152 {offsets = [0, 128], sizes = [2, 128], strides = [1, 1]} : vector<2x256xf32> to vector<2x128xf32>
    %154 = vector.extract_strided_slice %152 {offsets = [0, 0], sizes = [2, 128], strides = [1, 1]} : vector<2x256xf32> to vector<2x128xf32>
    %155 = vector.broadcast %7 : vector<1x128xf32> to vector<2x128xf32>
    %156 = arith.addf %153, %155 : vector<2x128xf32>
    %157 = arith.addf %156, %130 : vector<2x128xf32>
    %158 = arith.negf %157 : vector<2x128xf32>
    %159 = math.exp %158 : vector<2x128xf32>
    %cst_34 = arith.constant 1.000000e+00 : f32
    %160 = vector.broadcast %cst_34 : f32 to vector<2x128xf32>
    %161 = arith.addf %160, %159 : vector<2x128xf32>
    %162 = arith.divf %160, %161 : vector<2x128xf32>
    %163 = vector.extract_strided_slice %162 {offsets = [0, 0], sizes = [2, 32], strides = [1, 1]} : vector<2x128xf32> to vector<2x32xf32>
    %164 = vector.extract_strided_slice %162 {offsets = [0, 32], sizes = [2, 32], strides = [1, 1]} : vector<2x128xf32> to vector<2x32xf32>
    %165 = vector.extract_strided_slice %162 {offsets = [0, 64], sizes = [2, 32], strides = [1, 1]} : vector<2x128xf32> to vector<2x32xf32>
    %cst_35 = arith.constant 2.000000e+00 : f32
    %166 = vector.broadcast %cst_35 : f32 to vector<2x32xf32>
    %167 = arith.mulf %166, %165 : vector<2x32xf32>
    %cst_36 = arith.constant 1.000000e+00 : f32
    %168 = vector.broadcast %cst_36 : f32 to vector<2x32xf32>
    %169 = arith.subf %167, %168 : vector<2x32xf32>
    %170 = vector.extract_strided_slice %162 {offsets = [0, 96], sizes = [2, 32], strides = [1, 1]} : vector<2x128xf32> to vector<2x32xf32>
    %171 = arith.mulf %164, %126 : vector<2x32xf32>
    %172 = arith.mulf %163, %169 : vector<2x32xf32>
    %173 = arith.addf %171, %172 : vector<2x32xf32>
    %174 = math.tanh %173 : vector<2x32xf32>
    %175 = arith.mulf %170, %174 : vector<2x32xf32>
    %176 = arith.truncf %175 : vector<2x32xf32> to vector<2x32xbf16>
    %cst_37 = arith.constant dense<0.000000e+00> : vector<2x128xf32>
    %177 = tpu.matmul %176, %3, %cst_37 {dimension_numbers = #tpu.dot_dimension_numbers<[1], [0], [0], [1], [0, 0, 1, 1], [], []>} : vector<2x32xbf16>, vector<32x128xbf16>, vector<2x128xf32> -> vector<2x128xf32>
    %178 = vector.extract_strided_slice %32 {offsets = [6, 0], sizes = [2, 128], strides = [1, 1]} : vector<16x128xf32> to vector<2x128xf32>
    %179 = arith.addf %178, %154 : vector<2x128xf32>
    %180 = arith.negf %179 : vector<2x128xf32>
    %181 = math.exp %180 : vector<2x128xf32>
    %cst_38 = arith.constant 1.000000e+00 : f32
    %182 = vector.broadcast %cst_38 : f32 to vector<2x128xf32>
    %183 = arith.addf %182, %181 : vector<2x128xf32>
    %184 = arith.divf %182, %183 : vector<2x128xf32>
    %185 = vector.extract_strided_slice %184 {offsets = [0, 0], sizes = [2, 32], strides = [1, 1]} : vector<2x128xf32> to vector<2x32xf32>
    %186 = vector.extract_strided_slice %184 {offsets = [0, 32], sizes = [2, 32], strides = [1, 1]} : vector<2x128xf32> to vector<2x32xf32>
    %187 = vector.extract_strided_slice %184 {offsets = [0, 64], sizes = [2, 32], strides = [1, 1]} : vector<2x128xf32> to vector<2x32xf32>
    %cst_39 = arith.constant 2.000000e+00 : f32
    %188 = vector.broadcast %cst_39 : f32 to vector<2x32xf32>
    %189 = arith.mulf %188, %187 : vector<2x32xf32>
    %cst_40 = arith.constant 1.000000e+00 : f32
    %190 = vector.broadcast %cst_40 : f32 to vector<2x32xf32>
    %191 = arith.subf %189, %190 : vector<2x32xf32>
    %192 = vector.extract_strided_slice %184 {offsets = [0, 96], sizes = [2, 32], strides = [1, 1]} : vector<2x128xf32> to vector<2x32xf32>
    %193 = arith.mulf %186, %148 : vector<2x32xf32>
    %194 = arith.mulf %185, %191 : vector<2x32xf32>
    %195 = arith.addf %193, %194 : vector<2x32xf32>
    %196 = math.tanh %195 : vector<2x32xf32>
    %197 = arith.mulf %192, %196 : vector<2x32xf32>
    %198 = arith.truncf %197 : vector<2x32xf32> to vector<2x32xbf16>
    %cst_41 = arith.constant dense<0.000000e+00> : vector<2x256xf32>
    %199 = tpu.matmul %198, %1, %cst_41 {dimension_numbers = #tpu.dot_dimension_numbers<[1], [0], [0], [1], [0, 0, 1, 1], [], []>} : vector<2x32xbf16>, vector<32x256xbf16>, vector<2x256xf32> -> vector<2x256xf32>
    %200 = vector.extract_strided_slice %199 {offsets = [0, 128], sizes = [2, 128], strides = [1, 1]} : vector<2x256xf32> to vector<2x128xf32>
    %201 = vector.extract_strided_slice %199 {offsets = [0, 0], sizes = [2, 128], strides = [1, 1]} : vector<2x256xf32> to vector<2x128xf32>
    %202 = vector.broadcast %7 : vector<1x128xf32> to vector<2x128xf32>
    %203 = arith.addf %200, %202 : vector<2x128xf32>
    %204 = arith.addf %203, %177 : vector<2x128xf32>
    %205 = arith.negf %204 : vector<2x128xf32>
    %206 = math.exp %205 : vector<2x128xf32>
    %cst_42 = arith.constant 1.000000e+00 : f32
    %207 = vector.broadcast %cst_42 : f32 to vector<2x128xf32>
    %208 = arith.addf %207, %206 : vector<2x128xf32>
    %209 = arith.divf %207, %208 : vector<2x128xf32>
    %210 = vector.extract_strided_slice %209 {offsets = [0, 0], sizes = [2, 32], strides = [1, 1]} : vector<2x128xf32> to vector<2x32xf32>
    %211 = vector.extract_strided_slice %209 {offsets = [0, 32], sizes = [2, 32], strides = [1, 1]} : vector<2x128xf32> to vector<2x32xf32>
    %212 = vector.extract_strided_slice %209 {offsets = [0, 64], sizes = [2, 32], strides = [1, 1]} : vector<2x128xf32> to vector<2x32xf32>
    %cst_43 = arith.constant 2.000000e+00 : f32
    %213 = vector.broadcast %cst_43 : f32 to vector<2x32xf32>
    %214 = arith.mulf %213, %212 : vector<2x32xf32>
    %cst_44 = arith.constant 1.000000e+00 : f32
    %215 = vector.broadcast %cst_44 : f32 to vector<2x32xf32>
    %216 = arith.subf %214, %215 : vector<2x32xf32>
    %217 = vector.extract_strided_slice %209 {offsets = [0, 96], sizes = [2, 32], strides = [1, 1]} : vector<2x128xf32> to vector<2x32xf32>
    %218 = arith.mulf %211, %173 : vector<2x32xf32>
    %219 = arith.mulf %210, %216 : vector<2x32xf32>
    %220 = arith.addf %218, %219 : vector<2x32xf32>
    %221 = math.tanh %220 : vector<2x32xf32>
    %222 = arith.mulf %217, %221 : vector<2x32xf32>
    %223 = arith.truncf %222 : vector<2x32xf32> to vector<2x32xbf16>
    %cst_45 = arith.constant dense<0.000000e+00> : vector<2x128xf32>
    %224 = tpu.matmul %223, %3, %cst_45 {dimension_numbers = #tpu.dot_dimension_numbers<[1], [0], [0], [1], [0, 0, 1, 1], [], []>} : vector<2x32xbf16>, vector<32x128xbf16>, vector<2x128xf32> -> vector<2x128xf32>
    %225 = vector.extract_strided_slice %32 {offsets = [8, 0], sizes = [2, 128], strides = [1, 1]} : vector<16x128xf32> to vector<2x128xf32>
    %226 = arith.addf %225, %201 : vector<2x128xf32>
    %227 = arith.negf %226 : vector<2x128xf32>
    %228 = math.exp %227 : vector<2x128xf32>
    %cst_46 = arith.constant 1.000000e+00 : f32
    %229 = vector.broadcast %cst_46 : f32 to vector<2x128xf32>
    %230 = arith.addf %229, %228 : vector<2x128xf32>
    %231 = arith.divf %229, %230 : vector<2x128xf32>
    %232 = vector.extract_strided_slice %231 {offsets = [0, 0], sizes = [2, 32], strides = [1, 1]} : vector<2x128xf32> to vector<2x32xf32>
    %233 = vector.extract_strided_slice %231 {offsets = [0, 32], sizes = [2, 32], strides = [1, 1]} : vector<2x128xf32> to vector<2x32xf32>
    %234 = vector.extract_strided_slice %231 {offsets = [0, 64], sizes = [2, 32], strides = [1, 1]} : vector<2x128xf32> to vector<2x32xf32>
    %cst_47 = arith.constant 2.000000e+00 : f32
    %235 = vector.broadcast %cst_47 : f32 to vector<2x32xf32>
    %236 = arith.mulf %235, %234 : vector<2x32xf32>
    %cst_48 = arith.constant 1.000000e+00 : f32
    %237 = vector.broadcast %cst_48 : f32 to vector<2x32xf32>
    %238 = arith.subf %236, %237 : vector<2x32xf32>
    %239 = vector.extract_strided_slice %231 {offsets = [0, 96], sizes = [2, 32], strides = [1, 1]} : vector<2x128xf32> to vector<2x32xf32>
    %240 = arith.mulf %233, %195 : vector<2x32xf32>
    %241 = arith.mulf %232, %238 : vector<2x32xf32>
    %242 = arith.addf %240, %241 : vector<2x32xf32>
    %243 = math.tanh %242 : vector<2x32xf32>
    %244 = arith.mulf %239, %243 : vector<2x32xf32>
    %245 = arith.truncf %244 : vector<2x32xf32> to vector<2x32xbf16>
    %cst_49 = arith.constant dense<0.000000e+00> : vector<2x256xf32>
    %246 = tpu.matmul %245, %1, %cst_49 {dimension_numbers = #tpu.dot_dimension_numbers<[1], [0], [0], [1], [0, 0, 1, 1], [], []>} : vector<2x32xbf16>, vector<32x256xbf16>, vector<2x256xf32> -> vector<2x256xf32>
    %247 = vector.extract_strided_slice %246 {offsets = [0, 128], sizes = [2, 128], strides = [1, 1]} : vector<2x256xf32> to vector<2x128xf32>
    %248 = vector.extract_strided_slice %246 {offsets = [0, 0], sizes = [2, 128], strides = [1, 1]} : vector<2x256xf32> to vector<2x128xf32>
    %249 = vector.broadcast %7 : vector<1x128xf32> to vector<2x128xf32>
    %250 = arith.addf %247, %249 : vector<2x128xf32>
    %251 = arith.addf %250, %224 : vector<2x128xf32>
    %252 = arith.negf %251 : vector<2x128xf32>
    %253 = math.exp %252 : vector<2x128xf32>
    %cst_50 = arith.constant 1.000000e+00 : f32
    %254 = vector.broadcast %cst_50 : f32 to vector<2x128xf32>
    %255 = arith.addf %254, %253 : vector<2x128xf32>
    %256 = arith.divf %254, %255 : vector<2x128xf32>
    %257 = vector.extract_strided_slice %256 {offsets = [0, 0], sizes = [2, 32], strides = [1, 1]} : vector<2x128xf32> to vector<2x32xf32>
    %258 = vector.extract_strided_slice %256 {offsets = [0, 32], sizes = [2, 32], strides = [1, 1]} : vector<2x128xf32> to vector<2x32xf32>
    %259 = vector.extract_strided_slice %256 {offsets = [0, 64], sizes = [2, 32], strides = [1, 1]} : vector<2x128xf32> to vector<2x32xf32>
    %cst_51 = arith.constant 2.000000e+00 : f32
    %260 = vector.broadcast %cst_51 : f32 to vector<2x32xf32>
    %261 = arith.mulf %260, %259 : vector<2x32xf32>
    %cst_52 = arith.constant 1.000000e+00 : f32
    %262 = vector.broadcast %cst_52 : f32 to vector<2x32xf32>
    %263 = arith.subf %261, %262 : vector<2x32xf32>
    %264 = vector.extract_strided_slice %256 {offsets = [0, 96], sizes = [2, 32], strides = [1, 1]} : vector<2x128xf32> to vector<2x32xf32>
    %265 = arith.mulf %258, %220 : vector<2x32xf32>
    %266 = arith.mulf %257, %263 : vector<2x32xf32>
    %267 = arith.addf %265, %266 : vector<2x32xf32>
    %268 = math.tanh %267 : vector<2x32xf32>
    %269 = arith.mulf %264, %268 : vector<2x32xf32>
    %270 = arith.truncf %269 : vector<2x32xf32> to vector<2x32xbf16>
    %cst_53 = arith.constant dense<0.000000e+00> : vector<2x128xf32>
    %271 = tpu.matmul %270, %3, %cst_53 {dimension_numbers = #tpu.dot_dimension_numbers<[1], [0], [0], [1], [0, 0, 1, 1], [], []>} : vector<2x32xbf16>, vector<32x128xbf16>, vector<2x128xf32> -> vector<2x128xf32>
    %272 = vector.extract_strided_slice %32 {offsets = [10, 0], sizes = [2, 128], strides = [1, 1]} : vector<16x128xf32> to vector<2x128xf32>
    %273 = arith.addf %272, %248 : vector<2x128xf32>
    %274 = arith.negf %273 : vector<2x128xf32>
    %275 = math.exp %274 : vector<2x128xf32>
    %cst_54 = arith.constant 1.000000e+00 : f32
    %276 = vector.broadcast %cst_54 : f32 to vector<2x128xf32>
    %277 = arith.addf %276, %275 : vector<2x128xf32>
    %278 = arith.divf %276, %277 : vector<2x128xf32>
    %279 = vector.extract_strided_slice %278 {offsets = [0, 0], sizes = [2, 32], strides = [1, 1]} : vector<2x128xf32> to vector<2x32xf32>
    %280 = vector.extract_strided_slice %278 {offsets = [0, 32], sizes = [2, 32], strides = [1, 1]} : vector<2x128xf32> to vector<2x32xf32>
    %281 = vector.extract_strided_slice %278 {offsets = [0, 64], sizes = [2, 32], strides = [1, 1]} : vector<2x128xf32> to vector<2x32xf32>
    %cst_55 = arith.constant 2.000000e+00 : f32
    %282 = vector.broadcast %cst_55 : f32 to vector<2x32xf32>
    %283 = arith.mulf %282, %281 : vector<2x32xf32>
    %cst_56 = arith.constant 1.000000e+00 : f32
    %284 = vector.broadcast %cst_56 : f32 to vector<2x32xf32>
    %285 = arith.subf %283, %284 : vector<2x32xf32>
    %286 = vector.extract_strided_slice %278 {offsets = [0, 96], sizes = [2, 32], strides = [1, 1]} : vector<2x128xf32> to vector<2x32xf32>
    %287 = arith.mulf %280, %242 : vector<2x32xf32>
    %288 = arith.mulf %279, %285 : vector<2x32xf32>
    %289 = arith.addf %287, %288 : vector<2x32xf32>
    %290 = math.tanh %289 : vector<2x32xf32>
    %291 = arith.mulf %286, %290 : vector<2x32xf32>
    %292 = arith.truncf %291 : vector<2x32xf32> to vector<2x32xbf16>
    %cst_57 = arith.constant dense<0.000000e+00> : vector<2x256xf32>
    %293 = tpu.matmul %292, %1, %cst_57 {dimension_numbers = #tpu.dot_dimension_numbers<[1], [0], [0], [1], [0, 0, 1, 1], [], []>} : vector<2x32xbf16>, vector<32x256xbf16>, vector<2x256xf32> -> vector<2x256xf32>
    %294 = vector.extract_strided_slice %293 {offsets = [0, 128], sizes = [2, 128], strides = [1, 1]} : vector<2x256xf32> to vector<2x128xf32>
    %295 = vector.extract_strided_slice %293 {offsets = [0, 0], sizes = [2, 128], strides = [1, 1]} : vector<2x256xf32> to vector<2x128xf32>
    %296 = vector.broadcast %7 : vector<1x128xf32> to vector<2x128xf32>
    %297 = arith.addf %294, %296 : vector<2x128xf32>
    %298 = arith.addf %297, %271 : vector<2x128xf32>
    %299 = arith.negf %298 : vector<2x128xf32>
    %300 = math.exp %299 : vector<2x128xf32>
    %cst_58 = arith.constant 1.000000e+00 : f32
    %301 = vector.broadcast %cst_58 : f32 to vector<2x128xf32>
    %302 = arith.addf %301, %300 : vector<2x128xf32>
    %303 = arith.divf %301, %302 : vector<2x128xf32>
    %304 = vector.extract_strided_slice %303 {offsets = [0, 0], sizes = [2, 32], strides = [1, 1]} : vector<2x128xf32> to vector<2x32xf32>
    %305 = vector.extract_strided_slice %303 {offsets = [0, 32], sizes = [2, 32], strides = [1, 1]} : vector<2x128xf32> to vector<2x32xf32>
    %306 = vector.extract_strided_slice %303 {offsets = [0, 64], sizes = [2, 32], strides = [1, 1]} : vector<2x128xf32> to vector<2x32xf32>
    %cst_59 = arith.constant 2.000000e+00 : f32
    %307 = vector.broadcast %cst_59 : f32 to vector<2x32xf32>
    %308 = arith.mulf %307, %306 : vector<2x32xf32>
    %cst_60 = arith.constant 1.000000e+00 : f32
    %309 = vector.broadcast %cst_60 : f32 to vector<2x32xf32>
    %310 = arith.subf %308, %309 : vector<2x32xf32>
    %311 = vector.extract_strided_slice %303 {offsets = [0, 96], sizes = [2, 32], strides = [1, 1]} : vector<2x128xf32> to vector<2x32xf32>
    %312 = arith.mulf %305, %267 : vector<2x32xf32>
    %313 = arith.mulf %304, %310 : vector<2x32xf32>
    %314 = arith.addf %312, %313 : vector<2x32xf32>
    %315 = math.tanh %314 : vector<2x32xf32>
    %316 = arith.mulf %311, %315 : vector<2x32xf32>
    %317 = arith.truncf %316 : vector<2x32xf32> to vector<2x32xbf16>
    %cst_61 = arith.constant dense<0.000000e+00> : vector<2x128xf32>
    %318 = tpu.matmul %317, %3, %cst_61 {dimension_numbers = #tpu.dot_dimension_numbers<[1], [0], [0], [1], [0, 0, 1, 1], [], []>} : vector<2x32xbf16>, vector<32x128xbf16>, vector<2x128xf32> -> vector<2x128xf32>
    %319 = vector.extract_strided_slice %32 {offsets = [12, 0], sizes = [2, 128], strides = [1, 1]} : vector<16x128xf32> to vector<2x128xf32>
    %320 = arith.addf %319, %295 : vector<2x128xf32>
    %321 = arith.negf %320 : vector<2x128xf32>
    %322 = math.exp %321 : vector<2x128xf32>
    %cst_62 = arith.constant 1.000000e+00 : f32
    %323 = vector.broadcast %cst_62 : f32 to vector<2x128xf32>
    %324 = arith.addf %323, %322 : vector<2x128xf32>
    %325 = arith.divf %323, %324 : vector<2x128xf32>
    %326 = vector.extract_strided_slice %325 {offsets = [0, 0], sizes = [2, 32], strides = [1, 1]} : vector<2x128xf32> to vector<2x32xf32>
    %327 = vector.extract_strided_slice %325 {offsets = [0, 32], sizes = [2, 32], strides = [1, 1]} : vector<2x128xf32> to vector<2x32xf32>
    %328 = vector.extract_strided_slice %325 {offsets = [0, 64], sizes = [2, 32], strides = [1, 1]} : vector<2x128xf32> to vector<2x32xf32>
    %cst_63 = arith.constant 2.000000e+00 : f32
    %329 = vector.broadcast %cst_63 : f32 to vector<2x32xf32>
    %330 = arith.mulf %329, %328 : vector<2x32xf32>
    %cst_64 = arith.constant 1.000000e+00 : f32
    %331 = vector.broadcast %cst_64 : f32 to vector<2x32xf32>
    %332 = arith.subf %330, %331 : vector<2x32xf32>
    %333 = vector.extract_strided_slice %325 {offsets = [0, 96], sizes = [2, 32], strides = [1, 1]} : vector<2x128xf32> to vector<2x32xf32>
    %334 = arith.mulf %327, %289 : vector<2x32xf32>
    %335 = arith.mulf %326, %332 : vector<2x32xf32>
    %336 = arith.addf %334, %335 : vector<2x32xf32>
    %337 = math.tanh %336 : vector<2x32xf32>
    %338 = arith.mulf %333, %337 : vector<2x32xf32>
    %339 = arith.truncf %338 : vector<2x32xf32> to vector<2x32xbf16>
    %cst_65 = arith.constant dense<0.000000e+00> : vector<2x256xf32>
    %340 = tpu.matmul %339, %1, %cst_65 {dimension_numbers = #tpu.dot_dimension_numbers<[1], [0], [0], [1], [0, 0, 1, 1], [], []>} : vector<2x32xbf16>, vector<32x256xbf16>, vector<2x256xf32> -> vector<2x256xf32>
    %341 = vector.extract_strided_slice %340 {offsets = [0, 128], sizes = [2, 128], strides = [1, 1]} : vector<2x256xf32> to vector<2x128xf32>
    %342 = vector.extract_strided_slice %340 {offsets = [0, 0], sizes = [2, 128], strides = [1, 1]} : vector<2x256xf32> to vector<2x128xf32>
    %343 = vector.broadcast %7 : vector<1x128xf32> to vector<2x128xf32>
    %344 = arith.addf %341, %343 : vector<2x128xf32>
    %345 = arith.addf %344, %318 : vector<2x128xf32>
    %346 = arith.negf %345 : vector<2x128xf32>
    %347 = math.exp %346 : vector<2x128xf32>
    %cst_66 = arith.constant 1.000000e+00 : f32
    %348 = vector.broadcast %cst_66 : f32 to vector<2x128xf32>
    %349 = arith.addf %348, %347 : vector<2x128xf32>
    %350 = arith.divf %348, %349 : vector<2x128xf32>
    %351 = vector.extract_strided_slice %350 {offsets = [0, 0], sizes = [2, 32], strides = [1, 1]} : vector<2x128xf32> to vector<2x32xf32>
    %352 = vector.extract_strided_slice %350 {offsets = [0, 32], sizes = [2, 32], strides = [1, 1]} : vector<2x128xf32> to vector<2x32xf32>
    %353 = vector.extract_strided_slice %350 {offsets = [0, 64], sizes = [2, 32], strides = [1, 1]} : vector<2x128xf32> to vector<2x32xf32>
    %cst_67 = arith.constant 2.000000e+00 : f32
    %354 = vector.broadcast %cst_67 : f32 to vector<2x32xf32>
    %355 = arith.mulf %354, %353 : vector<2x32xf32>
    %cst_68 = arith.constant 1.000000e+00 : f32
    %356 = vector.broadcast %cst_68 : f32 to vector<2x32xf32>
    %357 = arith.subf %355, %356 : vector<2x32xf32>
    %358 = vector.extract_strided_slice %350 {offsets = [0, 96], sizes = [2, 32], strides = [1, 1]} : vector<2x128xf32> to vector<2x32xf32>
    %359 = arith.mulf %352, %314 : vector<2x32xf32>
    %360 = arith.mulf %351, %357 : vector<2x32xf32>
    %361 = arith.addf %359, %360 : vector<2x32xf32>
    %362 = math.tanh %361 : vector<2x32xf32>
    %363 = arith.mulf %358, %362 : vector<2x32xf32>
    %364 = arith.truncf %363 : vector<2x32xf32> to vector<2x32xbf16>
    %cst_69 = arith.constant dense<0.000000e+00> : vector<2x128xf32>
    %365 = tpu.matmul %364, %3, %cst_69 {dimension_numbers = #tpu.dot_dimension_numbers<[1], [0], [0], [1], [0, 0, 1, 1], [], []>} : vector<2x32xbf16>, vector<32x128xbf16>, vector<2x128xf32> -> vector<2x128xf32>
    %366 = vector.extract_strided_slice %32 {offsets = [14, 0], sizes = [2, 128], strides = [1, 1]} : vector<16x128xf32> to vector<2x128xf32>
    %367 = arith.addf %366, %342 : vector<2x128xf32>
    %368 = arith.negf %367 : vector<2x128xf32>
    %369 = math.exp %368 : vector<2x128xf32>
    %cst_70 = arith.constant 1.000000e+00 : f32
    %370 = vector.broadcast %cst_70 : f32 to vector<2x128xf32>
    %371 = arith.addf %370, %369 : vector<2x128xf32>
    %372 = arith.divf %370, %371 : vector<2x128xf32>
    %373 = vector.extract_strided_slice %372 {offsets = [0, 0], sizes = [2, 32], strides = [1, 1]} : vector<2x128xf32> to vector<2x32xf32>
    %374 = vector.extract_strided_slice %372 {offsets = [0, 32], sizes = [2, 32], strides = [1, 1]} : vector<2x128xf32> to vector<2x32xf32>
    %375 = vector.extract_strided_slice %372 {offsets = [0, 64], sizes = [2, 32], strides = [1, 1]} : vector<2x128xf32> to vector<2x32xf32>
    %cst_71 = arith.constant 2.000000e+00 : f32
    %376 = vector.broadcast %cst_71 : f32 to vector<2x32xf32>
    %377 = arith.mulf %376, %375 : vector<2x32xf32>
    %cst_72 = arith.constant 1.000000e+00 : f32
    %378 = vector.broadcast %cst_72 : f32 to vector<2x32xf32>
    %379 = arith.subf %377, %378 : vector<2x32xf32>
    %380 = vector.extract_strided_slice %372 {offsets = [0, 96], sizes = [2, 32], strides = [1, 1]} : vector<2x128xf32> to vector<2x32xf32>
    %381 = arith.mulf %374, %336 : vector<2x32xf32>
    %382 = arith.mulf %373, %379 : vector<2x32xf32>
    %383 = arith.addf %381, %382 : vector<2x32xf32>
    %384 = math.tanh %383 : vector<2x32xf32>
    %385 = arith.mulf %380, %384 : vector<2x32xf32>
    %386 = arith.truncf %385 : vector<2x32xf32> to vector<2x32xbf16>
    %cst_73 = arith.constant dense<0.000000e+00> : vector<2x256xf32>
    %387 = tpu.matmul %386, %1, %cst_73 {dimension_numbers = #tpu.dot_dimension_numbers<[1], [0], [0], [1], [0, 0, 1, 1], [], []>} : vector<2x32xbf16>, vector<32x256xbf16>, vector<2x256xf32> -> vector<2x256xf32>
    %388 = vector.extract_strided_slice %387 {offsets = [0, 128], sizes = [2, 128], strides = [1, 1]} : vector<2x256xf32> to vector<2x128xf32>
    %389 = vector.broadcast %7 : vector<1x128xf32> to vector<2x128xf32>
    %390 = arith.addf %388, %389 : vector<2x128xf32>
    %391 = arith.addf %390, %365 : vector<2x128xf32>
    %392 = arith.negf %391 : vector<2x128xf32>
    %393 = math.exp %392 : vector<2x128xf32>
    %cst_74 = arith.constant 1.000000e+00 : f32
    %394 = vector.broadcast %cst_74 : f32 to vector<2x128xf32>
    %395 = arith.addf %394, %393 : vector<2x128xf32>
    %396 = arith.divf %394, %395 : vector<2x128xf32>
    %397 = vector.extract_strided_slice %396 {offsets = [0, 0], sizes = [2, 32], strides = [1, 1]} : vector<2x128xf32> to vector<2x32xf32>
    %398 = vector.extract_strided_slice %396 {offsets = [0, 32], sizes = [2, 32], strides = [1, 1]} : vector<2x128xf32> to vector<2x32xf32>
    %399 = vector.extract_strided_slice %396 {offsets = [0, 64], sizes = [2, 32], strides = [1, 1]} : vector<2x128xf32> to vector<2x32xf32>
    %cst_75 = arith.constant 2.000000e+00 : f32
    %400 = vector.broadcast %cst_75 : f32 to vector<2x32xf32>
    %401 = arith.mulf %400, %399 : vector<2x32xf32>
    %cst_76 = arith.constant 1.000000e+00 : f32
    %402 = vector.broadcast %cst_76 : f32 to vector<2x32xf32>
    %403 = arith.subf %401, %402 : vector<2x32xf32>
    %404 = vector.extract_strided_slice %396 {offsets = [0, 96], sizes = [2, 32], strides = [1, 1]} : vector<2x128xf32> to vector<2x32xf32>
    %405 = arith.mulf %398, %361 : vector<2x32xf32>
    %406 = arith.mulf %397, %403 : vector<2x32xf32>
    %407 = arith.addf %405, %406 : vector<2x32xf32>
    %408 = math.tanh %407 : vector<2x32xf32>
    %409 = arith.mulf %404, %408 : vector<2x32xf32>
    %410 = arith.truncf %409 : vector<2x32xf32> to vector<2x32xbf16>
    %cst_77 = arith.constant dense<0.000000e+00> : vector<2x128xf32>
    %411 = tpu.matmul %410, %9, %cst_77 {dimension_numbers = #tpu.dot_dimension_numbers<[1], [0], [0], [1], [0, 0, 1, 1], [], []>} : vector<2x32xbf16>, vector<32x128xbf16>, vector<2x128xf32> -> vector<2x128xf32>
    %412 = vector.broadcast %10 : vector<1x128xf32> to vector<2x128xf32>
    %413 = arith.addf %411, %412 : vector<2x128xf32>
    %414 = vector.extract_strided_slice %413 {offsets = [0, 0], sizes = [2, 1], strides = [1, 1]} : vector<2x128xf32> to vector<2x1xf32>
    %c0_78 = arith.constant 0 : index
    %c0_79 = arith.constant 0 : index
    %415 = vector.load %arg2[%c0_78, %c0_79] : memref<2x1xf32, #tpu.memory_space<vmem>>, vector<2x1xf32>
    tpu.vector_store %arg2[%c0_78, %c0_79], %414 {strides = array<i32>} : memref<2x1xf32, #tpu.memory_space<vmem>>, vector<2x1xf32>,
    return
  }
}

</mosaic_0001>

<llo_original>
// kernel: tpu_custom_call.1
$region0: #{tpu_custom_call.1}
  #allocation0 [shape = 'u32[]', space=smem, size = 0x4, offset = 0x4, fixed_abs, tag = 'smem constant byte address 0x4 - core index']
  #allocation1 [shape = 'u32[144,128]{1,0:T(1,128)}', space=vmem, size = 0x12000, scoped, tag = 'internal scratch']
  %s0 = inlined_call_operand.vmem [shape: f32[2,8,4], index: 0, kind: input, shape index: {}]
  %s1 = inlined_call_operand.hbm [shape: f32[120,256], index: 1, kind: input, shape index: {}]
  %s2 = inlined_call_operand.vmem [shape: f32[2,1], index: 2, kind: output, shape index: {}]
  %s3 = sld [smem:[#allocation0]]
  $region22: #{tpu_custom_call.1} parent=0
    _
  %s5 = ssub.s32 1, %s3
  %s6 = scalar_select 0, %s5, %s3
  $region1: #{tpu_custom_call.1} parent=0
    #allocation2 [shape = 'u8[122880]{0}', space=vmem, size = 0x1e000, scoped, tag = 'input window, operand 1, single buffered']
    #allocation3 [shape = 's32[1]{0}', space=sflag, size = 0x4, scoped, tag = 'scoped memory for tpu_custom_call.1']
    %7 = vsyncpa [#allocation3], 0
    // Predicated region
    $region2: #{tpu_custom_call.1} parent=1 // pred_check
      _
    $region3: #{tpu_custom_call.1} parent=1 // pred_check_branch
      %9 = sbr.rel (0) target = $region5
    $region4: #{tpu_custom_call.1} parent=1 // pred_region
      _
    $region5: #{tpu_custom_call.1} parent=1 // pred_fallthru
      _
    // Predicated region
    $region6: #{tpu_custom_call.1} parent=1 // pred_check
      _
    $region7: #{tpu_custom_call.1} parent=1 // pred_check_branch
      %11 = sbr.rel (0) target = $region9
    $region8: #{tpu_custom_call.1} parent=1 // pred_region
      %s13 = ssub.s32 3840, 3840
      %14 = vsyncadd [#allocation3], %s13
      %s15 = sshll.u32 [#allocation2], 4
      %s16 = int_to_ptr.vmem [resolvable:$true] %s15
      %21 = dma.hbm_to_vmem [thread:$0]  %s1, 3840, %s16, [#allocation3], 256, 256, 16
    $region9: #{tpu_custom_call.1} parent=1 // pred_fallthru
      _
    // Predicated region
    $region10: #{tpu_custom_call.1} parent=1 // pred_check
      _
    $region11: #{tpu_custom_call.1} parent=1 // pred_check_branch
      %23 = sbr.rel (0) target = $region13
    $region12: #{tpu_custom_call.1} parent=1 // pred_region
      %24 = dma.done [#allocation3], 3840
    $region13: #{tpu_custom_call.1} parent=1 // pred_fallthru
      _
    %v26 = vld [vmem:[#allocation2] sm:$0xff]
    %v27 = vld [vmem:[#allocation2 + $0x8] sm:$0xff]
    %v28 = vld [vmem:[#allocation2 + $0x10] sm:$0xff]
    %v29 = vld [vmem:[#allocation2 + $0x18] sm:$0xff]
    %v30 = vld [vmem:[#allocation2 + $0x20] sm:$0xff]
    %v31 = vld [vmem:[#allocation2 + $0x28] sm:$0xff]
    %v32 = vld [vmem:[#allocation2 + $0x30] sm:$0xff]
    %v33 = vld [vmem:[#allocation2 + $0x38] sm:$0xff]
    %v34 = vpack.c.bf16 %v28, %v26
    %v35 = vpack.c.bf16 %v29, %v27
    %v36 = vpack.c.bf16 %v32, %v30
    %v37 = vpack.c.bf16 %v33, %v31
    %v38 = vld [vmem:[#allocation2 + $0x40] sm:$0xff]
    %v39 = vld [vmem:[#allocation2 + $0x50] sm:$0xff]
    %v40 = vld [vmem:[#allocation2 + $0x60] sm:$0xff]
    %v41 = vld [vmem:[#allocation2 + $0x70] sm:$0xff]
    %v42 = vpack.c.bf16 %v39, %v38
    %v43 = vpack.c.bf16 %v41, %v40
    %v44 = vld [vmem:[#allocation2 + $0x80] sm:$0xf]
    %v45 = vpack.c.bf16 %v44, %v44
    %v46 = vld [vmem:[#allocation2 + $0x90] ss:$0 sm:$0xff]
    %v47 = vld [vmem:[#allocation2 + $0x91] ss:$0 sm:$0xff]
    %v48 = vld [vmem:[#allocation2 + $0xa0] sm:$0xff]
    %v49 = vld [vmem:[#allocation2 + $0xb0] sm:$0xff]
    %v50 = vld [vmem:[#allocation2 + $0xc0] sm:$0xff]
    %v51 = vld [vmem:[#allocation2 + $0xd0] sm:$0xff]
    %v52 = vpack.c.bf16 %v49, %v48
    %v53 = vpack.c.bf16 %v51, %v50
    %v54 = vld [vmem:[#allocation2 + $0xe0] ss:$0 sm:$0xff]
    %v55 = vld [vmem:[%s0] sm:$0xff]
    %v56 = vld [vmem:[%s0 + $0x8] sm:$0xff]
    %v59 = vrot.slane %v56, 7
    %vm60 = vcmask 1041409
    %v61 = vsel %vm60, %v59, %v55
    %v63 = vrot.slane %v55, 7
    %v64 = vrot.slane %v56, 6
    %vm65 = vcmask 1043459
    %v66 = vsel %vm65, %v64, %v63
    %v68 = vrot.slane %v55, 6
    %v69 = vrot.slane %v56, 5
    %vm70 = vcmask 1045509
    %v71 = vsel %vm70, %v69, %v68
    %v73 = vrot.slane %v55, 5
    %v74 = vrot.slane %v56, 4
    %vm75 = vcmask 1047559
    %v76 = vsel %vm75, %v74, %v73
    %v78 = vrot.slane %v55, 4
    %v79 = vrot.slane %v56, 3
    %v80 = vsel %vm60, %v79, %v78
    %v82 = vrot.slane %v55, 3
    %v83 = vrot.slane %v56, 2
    %v84 = vsel %vm65, %v83, %v82
    %v86 = vrot.slane %v55, 2
    %v87 = vrot.slane %v56, 1
    %v88 = vsel %vm70, %v87, %v86
    %v90 = vrot.slane %v55, 1
    %v91 = vsel %vm75, %v56, %v90
    %vm93 = vcmask 1041408
    %v94 = vsel %vm93, %v61, %v66
    %vm95 = vcmask 1043456
    %v96 = vsel %vm95, %v94, %v71
    %vm97 = vcmask 1045504
    %v98 = vsel %vm97, %v96, %v76
    %v99 = vsel %vm93, %v80, %v84
    %v100 = vsel %vm95, %v99, %v88
    %v101 = vsel %vm97, %v100, %v91
    %v102 = vpack.c.bf16 %v101, %v98
    %vm103 = vcmask 31744
    %v105 = vsel %vm103, %v102, 0
    %v108 = vsel %vm93, %v45, 0
    %110 = vmatprep.subr.bf16.mxu0 0
    %111 = vmatpush1.bf16.msra.mxu0 %v108
    %112 = vmatprep.subr.bf16.mxu0 0
    %113 = vmatpush1.bf16.msra.mxu0 0
    %114 = vmatprep.subr.bf16.mxu0 0
    %115 = vmatpush1.bf16.msra.mxu0 0
    %116 = vmatprep.subr.bf16.mxu0 0
    %117 = vmatpush1.bf16.msra.mxu0 0
    %118 = vmatprep.subr.bf16.mxu0 0
    %119 = vmatpush1.bf16.msra.mxu0 0
    %120 = vmatprep.subr.bf16.mxu0 0
    %121 = vmatpush1.bf16.msra.mxu0 0
    %122 = vmatprep.subr.bf16.mxu0 0
    %123 = vmatpush1.bf16.msra.mxu0 0
    %124 = vmatprep.subr.bf16.mxu0 0
    %125 = vmatpush1.bf16.msra.mxu0 0
    %126 = vmatprep.subr.bf16.mxu0 0
    %127 = vmatpush1.bf16.msra.mxu0 0
    %128 = vmatprep.subr.bf16.mxu0 0
    %129 = vmatpush1.bf16.msra.mxu0 0
    %130 = vmatprep.subr.bf16.mxu0 0
    %131 = vmatpush1.bf16.msra.mxu0 0
    %132 = vmatprep.subr.bf16.mxu0 0
    %133 = vmatpush1.bf16.msra.mxu0 0
    %134 = vmatprep.subr.bf16.mxu0 0
    %135 = vmatpush1.bf16.msra.mxu0 0
    %136 = vmatprep.subr.bf16.mxu0 0
    %137 = vmatpush1.bf16.msra.mxu0 0
    %138 = vmatprep.subr.bf16.mxu0 0
    %139 = vmatpush1.bf16.msra.mxu0 0
    %140 = vmatprep.subr.bf16.mxu0 0
    %141 = vmatpush1.bf16.msra.mxu0 0
    %142 = vmatprep.mubr.bf16.mxu0 0
    %143 = vmatmul.mubr.bf16.gmra.mrb[0].mxu0 %v105
    %v144 = vpop.f32.mrb[0].mxu0
    %v145 = vadd.f32 %v46, %v144
    %v146 = vpop.f32.mrb[0].mxu0
    %v147 = vpop.f32.mrb[0].mxu0
    %v148 = vadd.f32 %v46, %v147
    %v149 = vpop.f32.mrb[0].mxu0
    %150 = vdwg.mxu0
    %v151 = vadd.f32 %v145, 0.0
    %v152 = vxor.u32 %v151, 2147483648
    %v153 = vmul.f32 %v152, 1.442695
    %v154 = vpow.pop %v153
    %v155 = vadd.f32 %v154, 1.0
    %v156 = vrcp.pop %v155
    %v157 = vmul.f32 1.0, %v156
    %v158 = vmul.f32 %v157, 2.0
    %v159 = vsub.f32 %v158, 1.0
    %v160 = vmul.f32 %v157, 0.0
    %162 = vrot.lane.b32.xlu0 %v159, 64
    %v163 = vpop.permute.xlu0 %162
    %v165 = vmul.f32 %v157, %v163
    %167 = vrot.lane.b32.xlu0 %v165, 32
    %v168 = vpop.permute.xlu0 %167
    %v170 = vadd.f32 %v160, %v168
    %v171 = vtanh.pop %v170
    %173 = vrot.lane.b32.xlu0 %v171, 64
    %v174 = vpop.permute.xlu0 %173
    %v176 = vmul.f32 %v157, %v174
    %v177 = vpack.c.bf16 %v176, %v176
    %179 = vrot.lane.b32.xlu0 %v177, 32
    %v180 = vpop.permute.xlu0 %179
    %vm181 = vcmask 261120
    %v183 = vsel %vm181, %v180, 0
    %185 = vmatprep.subr.bf16.mxu0 %v35
    %186 = vmatpush1.bf16.msra.mxu0 %v34
    %187 = vmatprep.subr.bf16.mxu0 %v37
    %188 = vmatpush1.bf16.msra.mxu0 %v36
    %189 = vmatprep.subr.bf16.mxu0 0
    %190 = vmatpush1.bf16.msra.mxu0 0
    %191 = vmatprep.subr.bf16.mxu0 0
    %192 = vmatpush1.bf16.msra.mxu0 0
    %193 = vmatprep.subr.bf16.mxu0 0
    %194 = vmatpush1.bf16.msra.mxu0 0
    %195 = vmatprep.subr.bf16.mxu0 0
    %196 = vmatpush1.bf16.msra.mxu0 0
    %197 = vmatprep.subr.bf16.mxu0 0
    %198 = vmatpush1.bf16.msra.mxu0 0
    %199 = vmatprep.subr.bf16.mxu0 0
    %200 = vmatpush1.bf16.msra.mxu0 0
    %201 = vmatprep.subr.bf16.mxu0 0
    %202 = vmatpush1.bf16.msra.mxu0 0
    %203 = vmatprep.subr.bf16.mxu0 0
    %204 = vmatpush1.bf16.msra.mxu0 0
    %205 = vmatprep.subr.bf16.mxu0 0
    %206 = vmatpush1.bf16.msra.mxu0 0
    %207 = vmatprep.subr.bf16.mxu0 0
    %208 = vmatpush1.bf16.msra.mxu0 0
    %209 = vmatprep.subr.bf16.mxu0 0
    %210 = vmatpush1.bf16.msra.mxu0 0
    %211 = vmatprep.subr.bf16.mxu0 0
    %212 = vmatpush1.bf16.msra.mxu0 0
    %213 = vmatprep.subr.bf16.mxu0 0
    %214 = vmatpush1.bf16.msra.mxu0 0
    %215 = vmatprep.subr.bf16.mxu0 0
    %216 = vmatpush1.bf16.msra.mxu0 0
    %217 = vmatprep.mubr.bf16.mxu0 0
    %218 = vmatmul.mubr.bf16.gmra.mrb[0].mxu0 %v183
    %v219 = vpop.f32.mrb[0].mxu0
    %v220 = vadd.f32 0.0, %v219
    %v221 = vpop.f32.mrb[0].mxu0
    %v222 = vadd.f32 0.0, %v221
    %v223 = vpop.f32.mrb[0].mxu0
    %v224 = vpop.f32.mrb[0].mxu0
    %225 = vdwg.mxu0
    %v226 = vadd.f32 %v222, %v47
    %v227 = vadd.f32 %v226, 0.0
    %v228 = vxor.u32 %v227, 2147483648
    %v229 = vmul.f32 %v228, 1.442695
    %v230 = vpow.pop %v229
    %v231 = vadd.f32 %v230, 1.0
    %v232 = vrcp.pop %v231
    %v233 = vmul.f32 1.0, %v232
    %v234 = vmul.f32 %v233, 2.0
    %v235 = vsub.f32 %v234, 1.0
    %v236 = vmul.f32 %v233, 0.0
    %238 = vrot.lane.b32.xlu0 %v235, 64
    %v239 = vpop.permute.xlu0 %238
    %v241 = vmul.f32 %v233, %v239
    %243 = vrot.lane.b32.xlu0 %v241, 32
    %v244 = vpop.permute.xlu0 %243
    %v246 = vadd.f32 %v236, %v244
    %v247 = vtanh.pop %v246
    %249 = vrot.lane.b32.xlu0 %v247, 64
    %v250 = vpop.permute.xlu0 %249
    %v252 = vmul.f32 %v233, %v250
    %v253 = vpack.c.bf16 %v252, %v252
    %255 = vrot.lane.b32.xlu0 %v253, 32
    %v256 = vpop.permute.xlu0 %255
    %v258 = vsel %vm181, %v256, 0
    %260 = vmatprep.subr.bf16.mxu0 0
    %261 = vmatpush1.bf16.msra.mxu0 %v42
    %262 = vmatprep.subr.bf16.mxu0 0
    %263 = vmatpush1.bf16.msra.mxu0 %v43
    %264 = vmatprep.subr.bf16.mxu0 0
    %265 = vmatpush1.bf16.msra.mxu0 0
    %266 = vmatprep.subr.bf16.mxu0 0
    %267 = vmatpush1.bf16.msra.mxu0 0
    %268 = vmatprep.subr.bf16.mxu0 0
    %269 = vmatpush1.bf16.msra.mxu0 0
    %270 = vmatprep.subr.bf16.mxu0 0
    %271 = vmatpush1.bf16.msra.mxu0 0
    %272 = vmatprep.subr.bf16.mxu0 0
    %273 = vmatpush1.bf16.msra.mxu0 0
    %274 = vmatprep.subr.bf16.mxu0 0
    %275 = vmatpush1.bf16.msra.mxu0 0
    %276 = vmatprep.subr.bf16.mxu0 0
    %277 = vmatpush1.bf16.msra.mxu0 0
    %278 = vmatprep.subr.bf16.mxu0 0
    %279 = vmatpush1.bf16.msra.mxu0 0
    %280 = vmatprep.subr.bf16.mxu0 0
    %281 = vmatpush1.bf16.msra.mxu0 0
    %282 = vmatprep.subr.bf16.mxu0 0
    %283 = vmatpush1.bf16.msra.mxu0 0
    %284 = vmatprep.subr.bf16.mxu0 0
    %285 = vmatpush1.bf16.msra.mxu0 0
    %286 = vmatprep.subr.bf16.mxu0 0
    %287 = vmatpush1.bf16.msra.mxu0 0
    %288 = vmatprep.subr.bf16.mxu0 0
    %289 = vmatpush1.bf16.msra.mxu0 0
    %290 = vmatprep.subr.bf16.mxu0 0
    %291 = vmatpush1.bf16.msra.mxu0 0
    %292 = vmatprep.mubr.bf16.mxu0 0
    %293 = vmatmul.mubr.bf16.gmra.mrb[0].mxu0 %v258
    %v294 = vpop.f32.mrb[0].mxu0
    %v295 = vadd.f32 0.0, %v294
    %v296 = vpop.f32.mrb[0].mxu0
    %v297 = vpop.f32.mrb[0].mxu0
    %v298 = vpop.f32.mrb[0].mxu0
    %299 = vdwg.mxu0
    %v301 = vrot.slane %v220, 6
    %v303 = vadd.f32 %v145, %v301
    %v304 = vxor.u32 %v303, 2147483648
    %v305 = vmul.f32 %v304, 1.442695
    %v306 = vpow.pop %v305
    %v307 = vadd.f32 %v306, 1.0
    %v308 = vrcp.pop %v307
    %v309 = vmul.f32 1.0, %v308
    %v310 = vmul.f32 %v309, 2.0
    %v311 = vsub.f32 %v310, 1.0
    %v313 = vrot.slane %v170, 6
    %v315 = vmul.f32 %v309, %v313
    %317 = vrot.lane.b32.xlu0 %v311, 64
    %v318 = vpop.permute.xlu0 %317
    %v320 = vmul.f32 %v309, %v318
    %322 = vrot.lane.b32.xlu0 %v320, 32
    %v323 = vpop.permute.xlu0 %322
    %v325 = vadd.f32 %v315, %v323
    %v326 = vtanh.pop %v325
    %328 = vrot.lane.b32.xlu0 %v326, 64
    %v329 = vpop.permute.xlu0 %328
    %v331 = vmul.f32 %v309, %v329
    %v332 = vpack.c.bf16 %v331, %v331
    %v334 = vrot.slane %v332, 1
    %335 = vrot.lane.b32.xlu0 %v334, 32
    %v336 = vpop.permute.xlu0 %335
    %v338 = vsel %vm181, %v336, 0
    %340 = vmatprep.subr.bf16.mxu0 %v35
    %341 = vmatpush1.bf16.msra.mxu0 %v34
    %342 = vmatprep.subr.bf16.mxu0 %v37
    %343 = vmatpush1.bf16.msra.mxu0 %v36
    %344 = vmatprep.subr.bf16.mxu0 0
    %345 = vmatpush1.bf16.msra.mxu0 0
    %346 = vmatprep.subr.bf16.mxu0 0
    %347 = vmatpush1.bf16.msra.mxu0 0
    %348 = vmatprep.subr.bf16.mxu0 0
    %349 = vmatpush1.bf16.msra.mxu0 0
    %350 = vmatprep.subr.bf16.mxu0 0
    %351 = vmatpush1.bf16.msra.mxu0 0
    %352 = vmatprep.subr.bf16.mxu0 0
    %353 = vmatpush1.bf16.msra.mxu0 0
    %354 = vmatprep.subr.bf16.mxu0 0
    %355 = vmatpush1.bf16.msra.mxu0 0
    %356 = vmatprep.subr.bf16.mxu0 0
    %357 = vmatpush1.bf16.msra.mxu0 0
    %358 = vmatprep.subr.bf16.mxu0 0
    %359 = vmatpush1.bf16.msra.mxu0 0
    %360 = vmatprep.subr.bf16.mxu0 0
    %361 = vmatpush1.bf16.msra.mxu0 0
    %362 = vmatprep.subr.bf16.mxu0 0
    %363 = vmatpush1.bf16.msra.mxu0 0
    %364 = vmatprep.subr.bf16.mxu0 0
    %365 = vmatpush1.bf16.msra.mxu0 0
    %366 = vmatprep.subr.bf16.mxu0 0
    %367 = vmatpush1.bf16.msra.mxu0 0
    %368 = vmatprep.subr.bf16.mxu0 0
    %369 = vmatpush1.bf16.msra.mxu0 0
    %370 = vmatprep.subr.bf16.mxu0 0
    %371 = vmatpush1.bf16.msra.mxu0 0
    %372 = vmatprep.mubr.bf16.mxu0 0
    %373 = vmatmul.mubr.bf16.gmra.mrb[0].mxu0 %v338
    %v374 = vpop.f32.mrb[0].mxu0
    %v375 = vadd.f32 0.0, %v374
    %v376 = vpop.f32.mrb[0].mxu0
    %v377 = vadd.f32 0.0, %v376
    %v378 = vpop.f32.mrb[0].mxu0
    %v379 = vpop.f32.mrb[0].mxu0
    %380 = vdwg.mxu0
    %v381 = vadd.f32 %v377, %v47
    %v382 = vadd.f32 %v381, %v295
    %v383 = vxor.u32 %v382, 2147483648
    %v384 = vmul.f32 %v383, 1.442695
    %v385 = vpow.pop %v384
    %v386 = vadd.f32 %v385, 1.0
    %v387 = vrcp.pop %v386
    %v388 = vmul.f32 1.0, %v387
    %v389 = vmul.f32 %v388, 2.0
    %v390 = vsub.f32 %v389, 1.0
    %v391 = vmul.f32 %v388, %v246
    %393 = vrot.lane.b32.xlu0 %v390, 64
    %v394 = vpop.permute.xlu0 %393
    %v396 = vmul.f32 %v388, %v394
    %398 = vrot.lane.b32.xlu0 %v396, 32
    %v399 = vpop.permute.xlu0 %398
    %v401 = vadd.f32 %v391, %v399
    %v402 = vtanh.pop %v401
    %404 = vrot.lane.b32.xlu0 %v402, 64
    %v405 = vpop.permute.xlu0 %404
    %v407 = vmul.f32 %v388, %v405
    %v408 = vpack.c.bf16 %v407, %v407
    %410 = vrot.lane.b32.xlu0 %v408, 32
    %v411 = vpop.permute.xlu0 %410
    %v413 = vsel %vm181, %v411, 0
    %415 = vmatprep.subr.bf16.mxu0 0
    %416 = vmatpush1.bf16.msra.mxu0 %v42
    %417 = vmatprep.subr.bf16.mxu0 0
    %418 = vmatpush1.bf16.msra.mxu0 %v43
    %419 = vmatprep.subr.bf16.mxu0 0
    %420 = vmatpush1.bf16.msra.mxu0 0
    %421 = vmatprep.subr.bf16.mxu0 0
    %422 = vmatpush1.bf16.msra.mxu0 0
    %423 = vmatprep.subr.bf16.mxu0 0
    %424 = vmatpush1.bf16.msra.mxu0 0
    %425 = vmatprep.subr.bf16.mxu0 0
    %426 = vmatpush1.bf16.msra.mxu0 0
    %427 = vmatprep.subr.bf16.mxu0 0
    %428 = vmatpush1.bf16.msra.mxu0 0
    %429 = vmatprep.subr.bf16.mxu0 0
    %430 = vmatpush1.bf16.msra.mxu0 0
    %431 = vmatprep.subr.bf16.mxu0 0
    %432 = vmatpush1.bf16.msra.mxu0 0
    %433 = vmatprep.subr.bf16.mxu0 0
    %434 = vmatpush1.bf16.msra.mxu0 0
    %435 = vmatprep.subr.bf16.mxu0 0
    %436 = vmatpush1.bf16.msra.mxu0 0
    %437 = vmatprep.subr.bf16.mxu0 0
    %438 = vmatpush1.bf16.msra.mxu0 0
    %439 = vmatprep.subr.bf16.mxu0 0
    %440 = vmatpush1.bf16.msra.mxu0 0
    %441 = vmatprep.subr.bf16.mxu0 0
    %442 = vmatpush1.bf16.msra.mxu0 0
    %443 = vmatprep.subr.bf16.mxu0 0
    %444 = vmatpush1.bf16.msra.mxu0 0
    %445 = vmatprep.subr.bf16.mxu0 0
    %446 = vmatpush1.bf16.msra.mxu0 0
    %447 = vmatprep.mubr.bf16.mxu0 0
    %448 = vmatmul.mubr.bf16.gmra.mrb[0].mxu0 %v413
    %v449 = vpop.f32.mrb[0].mxu0
    %v450 = vadd.f32 0.0, %v449
    %v451 = vpop.f32.mrb[0].mxu0
    %v452 = vpop.f32.mrb[0].mxu0
    %v453 = vpop.f32.mrb[0].mxu0
    %454 = vdwg.mxu0
    %v456 = vrot.slane %v375, 4
    %v458 = vadd.f32 %v145, %v456
    %v459 = vxor.u32 %v458, 2147483648
    %v460 = vmul.f32 %v459, 1.442695
    %v461 = vpow.pop %v460
    %v462 = vadd.f32 %v461, 1.0
    %v463 = vrcp.pop %v462
    %v464 = vmul.f32 1.0, %v463
    %v465 = vmul.f32 %v464, 2.0
    %v466 = vsub.f32 %v465, 1.0
    %v468 = vrot.slane %v325, 6
    %v470 = vmul.f32 %v464, %v468
    %472 = vrot.lane.b32.xlu0 %v466, 64
    %v473 = vpop.permute.xlu0 %472
    %v475 = vmul.f32 %v464, %v473
    %477 = vrot.lane.b32.xlu0 %v475, 32
    %v478 = vpop.permute.xlu0 %477
    %v480 = vadd.f32 %v470, %v478
    %v481 = vtanh.pop %v480
    %483 = vrot.lane.b32.xlu0 %v481, 64
    %v484 = vpop.permute.xlu0 %483
    %v486 = vmul.f32 %v464, %v484
    %v487 = vpack.c.bf16 %v486, %v486
    %v489 = vrot.slane %v487, 2
    %490 = vrot.lane.b32.xlu0 %v489, 32
    %v491 = vpop.permute.xlu0 %490
    %v493 = vsel %vm181, %v491, 0
    %495 = vmatprep.subr.bf16.mxu0 %v35
    %496 = vmatpush1.bf16.msra.mxu0 %v34
    %497 = vmatprep.subr.bf16.mxu0 %v37
    %498 = vmatpush1.bf16.msra.mxu0 %v36
    %499 = vmatprep.subr.bf16.mxu0 0
    %500 = vmatpush1.bf16.msra.mxu0 0
    %501 = vmatprep.subr.bf16.mxu0 0
    %502 = vmatpush1.bf16.msra.mxu0 0
    %503 = vmatprep.subr.bf16.mxu0 0
    %504 = vmatpush1.bf16.msra.mxu0 0
    %505 = vmatprep.subr.bf16.mxu0 0
    %506 = vmatpush1.bf16.msra.mxu0 0
    %507 = vmatprep.subr.bf16.mxu0 0
    %508 = vmatpush1.bf16.msra.mxu0 0
    %509 = vmatprep.subr.bf16.mxu0 0
    %510 = vmatpush1.bf16.msra.mxu0 0
    %511 = vmatprep.subr.bf16.mxu0 0
    %512 = vmatpush1.bf16.msra.mxu0 0
    %513 = vmatprep.subr.bf16.mxu0 0
    %514 = vmatpush1.bf16.msra.mxu0 0
    %515 = vmatprep.subr.bf16.mxu0 0
    %516 = vmatpush1.bf16.msra.mxu0 0
    %517 = vmatprep.subr.bf16.mxu0 0
    %518 = vmatpush1.bf16.msra.mxu0 0
    %519 = vmatprep.subr.bf16.mxu0 0
    %520 = vmatpush1.bf16.msra.mxu0 0
    %521 = vmatprep.subr.bf16.mxu0 0
    %522 = vmatpush1.bf16.msra.mxu0 0
    %523 = vmatprep.subr.bf16.mxu0 0
    %524 = vmatpush1.bf16.msra.mxu0 0
    %525 = vmatprep.subr.bf16.mxu0 0
    %526 = vmatpush1.bf16.msra.mxu0 0
    %527 = vmatprep.mubr.bf16.mxu0 0
    %528 = vmatmul.mubr.bf16.gmra.mrb[0].mxu0 %v493
    %v529 = vpop.f32.mrb[0].mxu0
    %v530 = vadd.f32 0.0, %v529
    %v531 = vpop.f32.mrb[0].mxu0
    %v532 = vadd.f32 0.0, %v531
    %v533 = vpop.f32.mrb[0].mxu0
    %v534 = vpop.f32.mrb[0].mxu0
    %535 = vdwg.mxu0
    %v536 = vadd.f32 %v532, %v47
    %v537 = vadd.f32 %v536, %v450
    %v538 = vxor.u32 %v537, 2147483648
    %v539 = vmul.f32 %v538, 1.442695
    %v540 = vpow.pop %v539
    %v541 = vadd.f32 %v540, 1.0
    %v542 = vrcp.pop %v541
    %v543 = vmul.f32 1.0, %v542
    %v544 = vmul.f32 %v543, 2.0
    %v545 = vsub.f32 %v544, 1.0
    %v546 = vmul.f32 %v543, %v401
    %548 = vrot.lane.b32.xlu0 %v545, 64
    %v549 = vpop.permute.xlu0 %548
    %v551 = vmul.f32 %v543, %v549
    %553 = vrot.lane.b32.xlu0 %v551, 32
    %v554 = vpop.permute.xlu0 %553
    %v556 = vadd.f32 %v546, %v554
    %v557 = vtanh.pop %v556
    %559 = vrot.lane.b32.xlu0 %v557, 64
    %v560 = vpop.permute.xlu0 %559
    %v562 = vmul.f32 %v543, %v560
    %v563 = vpack.c.bf16 %v562, %v562
    %565 = vrot.lane.b32.xlu0 %v563, 32
    %v566 = vpop.permute.xlu0 %565
    %v568 = vsel %vm181, %v566, 0
    %570 = vmatprep.subr.bf16.mxu0 0
    %571 = vmatpush1.bf16.msra.mxu0 %v42
    %572 = vmatprep.subr.bf16.mxu0 0
    %573 = vmatpush1.bf16.msra.mxu0 %v43
    %574 = vmatprep.subr.bf16.mxu0 0
    %575 = vmatpush1.bf16.msra.mxu0 0
    %576 = vmatprep.subr.bf16.mxu0 0
    %577 = vmatpush1.bf16.msra.mxu0 0
    %578 = vmatprep.subr.bf16.mxu0 0
    %579 = vmatpush1.bf16.msra.mxu0 0
    %580 = vmatprep.subr.bf16.mxu0 0
    %581 = vmatpush1.bf16.msra.mxu0 0
    %582 = vmatprep.subr.bf16.mxu0 0
    %583 = vmatpush1.bf16.msra.mxu0 0
    %584 = vmatprep.subr.bf16.mxu0 0
    %585 = vmatpush1.bf16.msra.mxu0 0
    %586 = vmatprep.subr.bf16.mxu0 0
    %587 = vmatpush1.bf16.msra.mxu0 0
    %588 = vmatprep.subr.bf16.mxu0 0
    %589 = vmatpush1.bf16.msra.mxu0 0
    %590 = vmatprep.subr.bf16.mxu0 0
    %591 = vmatpush1.bf16.msra.mxu0 0
    %592 = vmatprep.subr.bf16.mxu0 0
    %593 = vmatpush1.bf16.msra.mxu0 0
    %594 = vmatprep.subr.bf16.mxu0 0
    %595 = vmatpush1.bf16.msra.mxu0 0
    %596 = vmatprep.subr.bf16.mxu0 0
    %597 = vmatpush1.bf16.msra.mxu0 0
    %598 = vmatprep.subr.bf16.mxu0 0
    %599 = vmatpush1.bf16.msra.mxu0 0
    %600 = vmatprep.subr.bf16.mxu0 0
    %601 = vmatpush1.bf16.msra.mxu0 0
    %602 = vmatprep.mubr.bf16.mxu0 0
    %603 = vmatmul.mubr.bf16.gmra.mrb[0].mxu0 %v568
    %v604 = vpop.f32.mrb[0].mxu0
    %v605 = vadd.f32 0.0, %v604
    %v606 = vpop.f32.mrb[0].mxu0
    %v607 = vpop.f32.mrb[0].mxu0
    %v608 = vpop.f32.mrb[0].mxu0
    %609 = vdwg.mxu0
    %v611 = vrot.slane %v530, 2
    %v613 = vadd.f32 %v145, %v611
    %v614 = vxor.u32 %v613, 2147483648
    %v615 = vmul.f32 %v614, 1.442695
    %v616 = vpow.pop %v615
    %v617 = vadd.f32 %v616, 1.0
    %v618 = vrcp.pop %v617
    %v619 = vmul.f32 1.0, %v618
    %v620 = vmul.f32 %v619, 2.0
    %v621 = vsub.f32 %v620, 1.0
    %v623 = vrot.slane %v480, 6
    %v625 = vmul.f32 %v619, %v623
    %627 = vrot.lane.b32.xlu0 %v621, 64
    %v628 = vpop.permute.xlu0 %627
    %v630 = vmul.f32 %v619, %v628
    %632 = vrot.lane.b32.xlu0 %v630, 32
    %v633 = vpop.permute.xlu0 %632
    %v635 = vadd.f32 %v625, %v633
    %v636 = vtanh.pop %v635
    %638 = vrot.lane.b32.xlu0 %v636, 64
    %v639 = vpop.permute.xlu0 %638
    %v641 = vmul.f32 %v619, %v639
    %v642 = vpack.c.bf16 %v641, %v641
    %v644 = vrot.slane %v642, 3
    %645 = vrot.lane.b32.xlu0 %v644, 32
    %v646 = vpop.permute.xlu0 %645
    %v648 = vsel %vm181, %v646, 0
    %650 = vmatprep.subr.bf16.mxu0 %v35
    %651 = vmatpush1.bf16.msra.mxu0 %v34
    %652 = vmatprep.subr.bf16.mxu0 %v37
    %653 = vmatpush1.bf16.msra.mxu0 %v36
    %654 = vmatprep.subr.bf16.mxu0 0
    %655 = vmatpush1.bf16.msra.mxu0 0
    %656 = vmatprep.subr.bf16.mxu0 0
    %657 = vmatpush1.bf16.msra.mxu0 0
    %658 = vmatprep.subr.bf16.mxu0 0
    %659 = vmatpush1.bf16.msra.mxu0 0
    %660 = vmatprep.subr.bf16.mxu0 0
    %661 = vmatpush1.bf16.msra.mxu0 0
    %662 = vmatprep.subr.bf16.mxu0 0
    %663 = vmatpush1.bf16.msra.mxu0 0
    %664 = vmatprep.subr.bf16.mxu0 0
    %665 = vmatpush1.bf16.msra.mxu0 0
    %666 = vmatprep.subr.bf16.mxu0 0
    %667 = vmatpush1.bf16.msra.mxu0 0
    %668 = vmatprep.subr.bf16.mxu0 0
    %669 = vmatpush1.bf16.msra.mxu0 0
    %670 = vmatprep.subr.bf16.mxu0 0
    %671 = vmatpush1.bf16.msra.mxu0 0
    %672 = vmatprep.subr.bf16.mxu0 0
    %673 = vmatpush1.bf16.msra.mxu0 0
    %674 = vmatprep.subr.bf16.mxu0 0
    %675 = vmatpush1.bf16.msra.mxu0 0
    %676 = vmatprep.subr.bf16.mxu0 0
    %677 = vmatpush1.bf16.msra.mxu0 0
    %678 = vmatprep.subr.bf16.mxu0 0
    %679 = vmatpush1.bf16.msra.mxu0 0
    %680 = vmatprep.subr.bf16.mxu0 0
    %681 = vmatpush1.bf16.msra.mxu0 0
    %682 = vmatprep.mubr.bf16.mxu0 0
    %683 = vmatmul.mubr.bf16.gmra.mrb[0].mxu0 %v648
    %v684 = vpop.f32.mrb[0].mxu0
    %v685 = vadd.f32 0.0, %v684
    %v686 = vpop.f32.mrb[0].mxu0
    %v687 = vadd.f32 0.0, %v686
    %v688 = vpop.f32.mrb[0].mxu0
    %v689 = vpop.f32.mrb[0].mxu0
    %690 = vdwg.mxu0
    %v691 = vadd.f32 %v687, %v47
    %v692 = vadd.f32 %v691, %v605
    %v693 = vxor.u32 %v692, 2147483648
    %v694 = vmul.f32 %v693, 1.442695
    %v695 = vpow.pop %v694
    %v696 = vadd.f32 %v695, 1.0
    %v697 = vrcp.pop %v696
    %v698 = vmul.f32 1.0, %v697
    %v699 = vmul.f32 %v698, 2.0
    %v700 = vsub.f32 %v699, 1.0
    %v701 = vmul.f32 %v698, %v556
    %703 = vrot.lane.b32.xlu0 %v700, 64
    %v704 = vpop.permute.xlu0 %703
    %v706 = vmul.f32 %v698, %v704
    %708 = vrot.lane.b32.xlu0 %v706, 32
    %v709 = vpop.permute.xlu0 %708
    %v711 = vadd.f32 %v701, %v709
    %v712 = vtanh.pop %v711
    %714 = vrot.lane.b32.xlu0 %v712, 64
    %v715 = vpop.permute.xlu0 %714
    %v717 = vmul.f32 %v698, %v715
    %v718 = vpack.c.bf16 %v717, %v717
    %720 = vrot.lane.b32.xlu0 %v718, 32
    %v721 = vpop.permute.xlu0 %720
    %v723 = vsel %vm181, %v721, 0
    %725 = vmatprep.subr.bf16.mxu0 0
    %726 = vmatpush1.bf16.msra.mxu0 %v42
    %727 = vmatprep.subr.bf16.mxu0 0
    %728 = vmatpush1.bf16.msra.mxu0 %v43
    %729 = vmatprep.subr.bf16.mxu0 0
    %730 = vmatpush1.bf16.msra.mxu0 0
    %731 = vmatprep.subr.bf16.mxu0 0
    %732 = vmatpush1.bf16.msra.mxu0 0
    %733 = vmatprep.subr.bf16.mxu0 0
    %734 = vmatpush1.bf16.msra.mxu0 0
    %735 = vmatprep.subr.bf16.mxu0 0
    %736 = vmatpush1.bf16.msra.mxu0 0
    %737 = vmatprep.subr.bf16.mxu0 0
    %738 = vmatpush1.bf16.msra.mxu0 0
    %739 = vmatprep.subr.bf16.mxu0 0
    %740 = vmatpush1.bf16.msra.mxu0 0
    %741 = vmatprep.subr.bf16.mxu0 0
    %742 = vmatpush1.bf16.msra.mxu0 0
    %743 = vmatprep.subr.bf16.mxu0 0
    %744 = vmatpush1.bf16.msra.mxu0 0
    %745 = vmatprep.subr.bf16.mxu0 0
    %746 = vmatpush1.bf16.msra.mxu0 0
    %747 = vmatprep.subr.bf16.mxu0 0
    %748 = vmatpush1.bf16.msra.mxu0 0
    %749 = vmatprep.subr.bf16.mxu0 0
    %750 = vmatpush1.bf16.msra.mxu0 0
    %751 = vmatprep.subr.bf16.mxu0 0
    %752 = vmatpush1.bf16.msra.mxu0 0
    %753 = vmatprep.subr.bf16.mxu0 0
    %754 = vmatpush1.bf16.msra.mxu0 0
    %755 = vmatprep.subr.bf16.mxu0 0
    %756 = vmatpush1.bf16.msra.mxu0 0
    %757 = vmatprep.mubr.bf16.mxu0 0
    %758 = vmatmul.mubr.bf16.gmra.mrb[0].mxu0 %v723
    %v759 = vpop.f32.mrb[0].mxu0
    %v760 = vadd.f32 0.0, %v759
    %v761 = vpop.f32.mrb[0].mxu0
    %v762 = vpop.f32.mrb[0].mxu0
    %v763 = vpop.f32.mrb[0].mxu0
    %764 = vdwg.mxu0
    %v765 = vadd.f32 %v148, %v685
    %v766 = vxor.u32 %v765, 2147483648
    %v767 = vmul.f32 %v766, 1.442695
    %v768 = vpow.pop %v767
    %v769 = vadd.f32 %v768, 1.0
    %v770 = vrcp.pop %v769
    %v771 = vmul.f32 1.0, %v770
    %v772 = vmul.f32 %v771, 2.0
    %v773 = vsub.f32 %v772, 1.0
    %v775 = vrot.slane %v635, 6
    %v777 = vmul.f32 %v771, %v775
    %779 = vrot.lane.b32.xlu0 %v773, 64
    %v780 = vpop.permute.xlu0 %779
    %v782 = vmul.f32 %v771, %v780
    %784 = vrot.lane.b32.xlu0 %v782, 32
    %v785 = vpop.permute.xlu0 %784
    %v787 = vadd.f32 %v777, %v785
    %v788 = vtanh.pop %v787
    %790 = vrot.lane.b32.xlu0 %v788, 64
    %v791 = vpop.permute.xlu0 %790
    %v793 = vmul.f32 %v771, %v791
    %v794 = vpack.c.bf16 %v793, %v793
    %796 = vrot.lane.b32.xlu0 %v794, 32
    %v797 = vpop.permute.xlu0 %796
    %v799 = vsel %vm181, %v797, 0
    %801 = vmatprep.subr.bf16.mxu0 %v35
    %802 = vmatpush1.bf16.msra.mxu0 %v34
    %803 = vmatprep.subr.bf16.mxu0 %v37
    %804 = vmatpush1.bf16.msra.mxu0 %v36
    %805 = vmatprep.subr.bf16.mxu0 0
    %806 = vmatpush1.bf16.msra.mxu0 0
    %807 = vmatprep.subr.bf16.mxu0 0
    %808 = vmatpush1.bf16.msra.mxu0 0
    %809 = vmatprep.subr.bf16.mxu0 0
    %810 = vmatpush1.bf16.msra.mxu0 0
    %811 = vmatprep.subr.bf16.mxu0 0
    %812 = vmatpush1.bf16.msra.mxu0 0
    %813 = vmatprep.subr.bf16.mxu0 0
    %814 = vmatpush1.bf16.msra.mxu0 0
    %815 = vmatprep.subr.bf16.mxu0 0
    %816 = vmatpush1.bf16.msra.mxu0 0
    %817 = vmatprep.subr.bf16.mxu0 0
    %818 = vmatpush1.bf16.msra.mxu0 0
    %819 = vmatprep.subr.bf16.mxu0 0
    %820 = vmatpush1.bf16.msra.mxu0 0
    %821 = vmatprep.subr.bf16.mxu0 0
    %822 = vmatpush1.bf16.msra.mxu0 0
    %823 = vmatprep.subr.bf16.mxu0 0
    %824 = vmatpush1.bf16.msra.mxu0 0
    %825 = vmatprep.subr.bf16.mxu0 0
    %826 = vmatpush1.bf16.msra.mxu0 0
    %827 = vmatprep.subr.bf16.mxu0 0
    %828 = vmatpush1.bf16.msra.mxu0 0
    %829 = vmatprep.subr.bf16.mxu0 0
    %830 = vmatpush1.bf16.msra.mxu0 0
    %831 = vmatprep.subr.bf16.mxu0 0
    %832 = vmatpush1.bf16.msra.mxu0 0
    %833 = vmatprep.mubr.bf16.mxu0 0
    %834 = vmatmul.mubr.bf16.gmra.mrb[0].mxu0 %v799
    %v835 = vpop.f32.mrb[0].mxu0
    %v836 = vadd.f32 0.0, %v835
    %v837 = vpop.f32.mrb[0].mxu0
    %v838 = vadd.f32 0.0, %v837
    %v839 = vpop.f32.mrb[0].mxu0
    %v840 = vpop.f32.mrb[0].mxu0
    %841 = vdwg.mxu0
    %v842 = vadd.f32 %v838, %v47
    %v843 = vadd.f32 %v842, %v760
    %v844 = vxor.u32 %v843, 2147483648
    %v845 = vmul.f32 %v844, 1.442695
    %v846 = vpow.pop %v845
    %v847 = vadd.f32 %v846, 1.0
    %v848 = vrcp.pop %v847
    %v849 = vmul.f32 1.0, %v848
    %v850 = vmul.f32 %v849, 2.0
    %v851 = vsub.f32 %v850, 1.0
    %v852 = vmul.f32 %v849, %v711
    %854 = vrot.lane.b32.xlu0 %v851, 64
    %v855 = vpop.permute.xlu0 %854
    %v857 = vmul.f32 %v849, %v855
    %859 = vrot.lane.b32.xlu0 %v857, 32
    %v860 = vpop.permute.xlu0 %859
    %v862 = vadd.f32 %v852, %v860
    %v863 = vtanh.pop %v862
    %865 = vrot.lane.b32.xlu0 %v863, 64
    %v866 = vpop.permute.xlu0 %865
    %v868 = vmul.f32 %v849, %v866
    %v869 = vpack.c.bf16 %v868, %v868
    %871 = vrot.lane.b32.xlu0 %v869, 32
    %v872 = vpop.permute.xlu0 %871
    %v874 = vsel %vm181, %v872, 0
    %876 = vmatprep.subr.bf16.mxu0 0
    %877 = vmatpush1.bf16.msra.mxu0 %v42
    %878 = vmatprep.subr.bf16.mxu0 0
    %879 = vmatpush1.bf16.msra.mxu0 %v43
    %880 = vmatprep.subr.bf16.mxu0 0
    %881 = vmatpush1.bf16.msra.mxu0 0
    %882 = vmatprep.subr.bf16.mxu0 0
    %883 = vmatpush1.bf16.msra.mxu0 0
    %884 = vmatprep.subr.bf16.mxu0 0
    %885 = vmatpush1.bf16.msra.mxu0 0
    %886 = vmatprep.subr.bf16.mxu0 0
    %887 = vmatpush1.bf16.msra.mxu0 0
    %888 = vmatprep.subr.bf16.mxu0 0
    %889 = vmatpush1.bf16.msra.mxu0 0
    %890 = vmatprep.subr.bf16.mxu0 0
    %891 = vmatpush1.bf16.msra.mxu0 0
    %892 = vmatprep.subr.bf16.mxu0 0
    %893 = vmatpush1.bf16.msra.mxu0 0
    %894 = vmatprep.subr.bf16.mxu0 0
    %895 = vmatpush1.bf16.msra.mxu0 0
    %896 = vmatprep.subr.bf16.mxu0 0
    %897 = vmatpush1.bf16.msra.mxu0 0
    %898 = vmatprep.subr.bf16.mxu0 0
    %899 = vmatpush1.bf16.msra.mxu0 0
    %900 = vmatprep.subr.bf16.mxu0 0
    %901 = vmatpush1.bf16.msra.mxu0 0
    %902 = vmatprep.subr.bf16.mxu0 0
    %903 = vmatpush1.bf16.msra.mxu0 0
    %904 = vmatprep.subr.bf16.mxu0 0
    %905 = vmatpush1.bf16.msra.mxu0 0
    %906 = vmatprep.subr.bf16.mxu0 0
    %907 = vmatpush1.bf16.msra.mxu0 0
    %908 = vmatprep.mubr.bf16.mxu0 0
    %909 = vmatmul.mubr.bf16.gmra.mrb[0].mxu0 %v874
    %v910 = vpop.f32.mrb[0].mxu0
    %v911 = vadd.f32 0.0, %v910
    %v912 = vpop.f32.mrb[0].mxu0
    %v913 = vpop.f32.mrb[0].mxu0
    %v914 = vpop.f32.mrb[0].mxu0
    %915 = vdwg.mxu0
    %v917 = vrot.slane %v836, 6
    %v919 = vadd.f32 %v148, %v917
    %v920 = vxor.u32 %v919, 2147483648
    %v921 = vmul.f32 %v920, 1.442695
    %v922 = vpow.pop %v921
    %v923 = vadd.f32 %v922, 1.0
    %v924 = vrcp.pop %v923
    %v925 = vmul.f32 1.0, %v924
    %v926 = vmul.f32 %v925, 2.0
    %v927 = vsub.f32 %v926, 1.0
    %v929 = vrot.slane %v787, 6
    %v931 = vmul.f32 %v925, %v929
    %933 = vrot.lane.b32.xlu0 %v927, 64
    %v934 = vpop.permute.xlu0 %933
    %v936 = vmul.f32 %v925, %v934
    %938 = vrot.lane.b32.xlu0 %v936, 32
    %v939 = vpop.permute.xlu0 %938
    %v941 = vadd.f32 %v931, %v939
    %v942 = vtanh.pop %v941
    %944 = vrot.lane.b32.xlu0 %v942, 64
    %v945 = vpop.permute.xlu0 %944
    %v947 = vmul.f32 %v925, %v945
    %v948 = vpack.c.bf16 %v947, %v947
    %v950 = vrot.slane %v948, 1
    %951 = vrot.lane.b32.xlu0 %v950, 32
    %v952 = vpop.permute.xlu0 %951
    %v954 = vsel %vm181, %v952, 0
    %956 = vmatprep.subr.bf16.mxu0 %v35
    %957 = vmatpush1.bf16.msra.mxu0 %v34
    %958 = vmatprep.subr.bf16.mxu0 %v37
    %959 = vmatpush1.bf16.msra.mxu0 %v36
    %960 = vmatprep.subr.bf16.mxu0 0
    %961 = vmatpush1.bf16.msra.mxu0 0
    %962 = vmatprep.subr.bf16.mxu0 0
    %963 = vmatpush1.bf16.msra.mxu0 0
    %964 = vmatprep.subr.bf16.mxu0 0
    %965 = vmatpush1.bf16.msra.mxu0 0
    %966 = vmatprep.subr.bf16.mxu0 0
    %967 = vmatpush1.bf16.msra.mxu0 0
    %968 = vmatprep.subr.bf16.mxu0 0
    %969 = vmatpush1.bf16.msra.mxu0 0
    %970 = vmatprep.subr.bf16.mxu0 0
    %971 = vmatpush1.bf16.msra.mxu0 0
    %972 = vmatprep.subr.bf16.mxu0 0
    %973 = vmatpush1.bf16.msra.mxu0 0
    %974 = vmatprep.subr.bf16.mxu0 0
    %975 = vmatpush1.bf16.msra.mxu0 0
    %976 = vmatprep.subr.bf16.mxu0 0
    %977 = vmatpush1.bf16.msra.mxu0 0
    %978 = vmatprep.subr.bf16.mxu0 0
    %979 = vmatpush1.bf16.msra.mxu0 0
    %980 = vmatprep.subr.bf16.mxu0 0
    %981 = vmatpush1.bf16.msra.mxu0 0
    %982 = vmatprep.subr.bf16.mxu0 0
    %983 = vmatpush1.bf16.msra.mxu0 0
    %984 = vmatprep.subr.bf16.mxu0 0
    %985 = vmatpush1.bf16.msra.mxu0 0
    %986 = vmatprep.subr.bf16.mxu0 0
    %987 = vmatpush1.bf16.msra.mxu0 0
    %988 = vmatprep.mubr.bf16.mxu0 0
    %989 = vmatmul.mubr.bf16.gmra.mrb[0].mxu0 %v954
    %v990 = vpop.f32.mrb[0].mxu0
    %v991 = vadd.f32 0.0, %v990
    %v992 = vpop.f32.mrb[0].mxu0
    %v993 = vadd.f32 0.0, %v992
    %v994 = vpop.f32.mrb[0].mxu0
    %v995 = vpop.f32.mrb[0].mxu0
    %996 = vdwg.mxu0
    %v997 = vadd.f32 %v993, %v47
    %v998 = vadd.f32 %v997, %v911
    %v999 = vxor.u32 %v998, 2147483648
    %v1000 = vmul.f32 %v999, 1.442695
    %v1001 = vpow.pop %v1000
    %v1002 = vadd.f32 %v1001, 1.0
    %v1003 = vrcp.pop %v1002
    %v1004 = vmul.f32 1.0, %v1003
    %v1005 = vmul.f32 %v1004, 2.0
    %v1006 = vsub.f32 %v1005, 1.0
    %v1007 = vmul.f32 %v1004, %v862
    %1009 = vrot.lane.b32.xlu0 %v1006, 64
    %v1010 = vpop.permute.xlu0 %1009
    %v1012 = vmul.f32 %v1004, %v1010
    %1014 = vrot.lane.b32.xlu0 %v1012, 32
    %v1015 = vpop.permute.xlu0 %1014
    %v1017 = vadd.f32 %v1007, %v1015
    %v1018 = vtanh.pop %v1017
    %1020 = vrot.lane.b32.xlu0 %v1018, 64
    %v1021 = vpop.permute.xlu0 %1020
    %v1023 = vmul.f32 %v1004, %v1021
    %v1024 = vpack.c.bf16 %v1023, %v1023
    %1026 = vrot.lane.b32.xlu0 %v1024, 32
    %v1027 = vpop.permute.xlu0 %1026
    %v1029 = vsel %vm181, %v1027, 0
    %1031 = vmatprep.subr.bf16.mxu0 0
    %1032 = vmatpush1.bf16.msra.mxu0 %v42
    %1033 = vmatprep.subr.bf16.mxu0 0
    %1034 = vmatpush1.bf16.msra.mxu0 %v43
    %1035 = vmatprep.subr.bf16.mxu0 0
    %1036 = vmatpush1.bf16.msra.mxu0 0
    %1037 = vmatprep.subr.bf16.mxu0 0
    %1038 = vmatpush1.bf16.msra.mxu0 0
    %1039 = vmatprep.subr.bf16.mxu0 0
    %1040 = vmatpush1.bf16.msra.mxu0 0
    %1041 = vmatprep.subr.bf16.mxu0 0
    %1042 = vmatpush1.bf16.msra.mxu0 0
    %1043 = vmatprep.subr.bf16.mxu0 0
    %1044 = vmatpush1.bf16.msra.mxu0 0
    %1045 = vmatprep.subr.bf16.mxu0 0
    %1046 = vmatpush1.bf16.msra.mxu0 0
    %1047 = vmatprep.subr.bf16.mxu0 0
    %1048 = vmatpush1.bf16.msra.mxu0 0
    %1049 = vmatprep.subr.bf16.mxu0 0
    %1050 = vmatpush1.bf16.msra.mxu0 0
    %1051 = vmatprep.subr.bf16.mxu0 0
    %1052 = vmatpush1.bf16.msra.mxu0 0
    %1053 = vmatprep.subr.bf16.mxu0 0
    %1054 = vmatpush1.bf16.msra.mxu0 0
    %1055 = vmatprep.subr.bf16.mxu0 0
    %1056 = vmatpush1.bf16.msra.mxu0 0
    %1057 = vmatprep.subr.bf16.mxu0 0
    %1058 = vmatpush1.bf16.msra.mxu0 0
    %1059 = vmatprep.subr.bf16.mxu0 0
    %1060 = vmatpush1.bf16.msra.mxu0 0
    %1061 = vmatprep.subr.bf16.mxu0 0
    %1062 = vmatpush1.bf16.msra.mxu0 0
    %1063 = vmatprep.mubr.bf16.mxu0 0
    %1064 = vmatmul.mubr.bf16.gmra.mrb[0].mxu0 %v1029
    %v1065 = vpop.f32.mrb[0].mxu0
    %v1066 = vadd.f32 0.0, %v1065
    %v1067 = vpop.f32.mrb[0].mxu0
    %v1068 = vpop.f32.mrb[0].mxu0
    %v1069 = vpop.f32.mrb[0].mxu0
    %1070 = vdwg.mxu0
    %v1072 = vrot.slane %v991, 4
    %v1074 = vadd.f32 %v148, %v1072
    %v1075 = vxor.u32 %v1074, 2147483648
    %v1076 = vmul.f32 %v1075, 1.442695
    %v1077 = vpow.pop %v1076
    %v1078 = vadd.f32 %v1077, 1.0
    %v1079 = vrcp.pop %v1078
    %v1080 = vmul.f32 1.0, %v1079
    %v1081 = vmul.f32 %v1080, 2.0
    %v1082 = vsub.f32 %v1081, 1.0
    %v1084 = vrot.slane %v941, 6
    %v1086 = vmul.f32 %v1080, %v1084
    %1088 = vrot.lane.b32.xlu0 %v1082, 64
    %v1089 = vpop.permute.xlu0 %1088
    %v1091 = vmul.f32 %v1080, %v1089
    %1093 = vrot.lane.b32.xlu0 %v1091, 32
    %v1094 = vpop.permute.xlu0 %1093
    %v1096 = vadd.f32 %v1086, %v1094
    %v1097 = vtanh.pop %v1096
    %1099 = vrot.lane.b32.xlu0 %v1097, 64
    %v1100 = vpop.permute.xlu0 %1099
    %v1102 = vmul.f32 %v1080, %v1100
    %v1103 = vpack.c.bf16 %v1102, %v1102
    %v1105 = vrot.slane %v1103, 2
    %1106 = vrot.lane.b32.xlu0 %v1105, 32
    %v1107 = vpop.permute.xlu0 %1106
    %v1109 = vsel %vm181, %v1107, 0
    %1111 = vmatprep.subr.bf16.mxu0 %v35
    %1112 = vmatpush1.bf16.msra.mxu0 %v34
    %1113 = vmatprep.subr.bf16.mxu0 %v37
    %1114 = vmatpush1.bf16.msra.mxu0 %v36
    %1115 = vmatprep.subr.bf16.mxu0 0
    %1116 = vmatpush1.bf16.msra.mxu0 0
    %1117 = vmatprep.subr.bf16.mxu0 0
    %1118 = vmatpush1.bf16.msra.mxu0 0
    %1119 = vmatprep.subr.bf16.mxu0 0
    %1120 = vmatpush1.bf16.msra.mxu0 0
    %1121 = vmatprep.subr.bf16.mxu0 0
    %1122 = vmatpush1.bf16.msra.mxu0 0
    %1123 = vmatprep.subr.bf16.mxu0 0
    %1124 = vmatpush1.bf16.msra.mxu0 0
    %1125 = vmatprep.subr.bf16.mxu0 0
    %1126 = vmatpush1.bf16.msra.mxu0 0
    %1127 = vmatprep.subr.bf16.mxu0 0
    %1128 = vmatpush1.bf16.msra.mxu0 0
    %1129 = vmatprep.subr.bf16.mxu0 0
    %1130 = vmatpush1.bf16.msra.mxu0 0
    %1131 = vmatprep.subr.bf16.mxu0 0
    %1132 = vmatpush1.bf16.msra.mxu0 0
    %1133 = vmatprep.subr.bf16.mxu0 0
    %1134 = vmatpush1.bf16.msra.mxu0 0
    %1135 = vmatprep.subr.bf16.mxu0 0
    %1136 = vmatpush1.bf16.msra.mxu0 0
    %1137 = vmatprep.subr.bf16.mxu0 0
    %1138 = vmatpush1.bf16.msra.mxu0 0
    %1139 = vmatprep.subr.bf16.mxu0 0
    %1140 = vmatpush1.bf16.msra.mxu0 0
    %1141 = vmatprep.subr.bf16.mxu0 0
    %1142 = vmatpush1.bf16.msra.mxu0 0
    %1143 = vmatprep.mubr.bf16.mxu0 0
    %1144 = vmatmul.mubr.bf16.gmra.mrb[0].mxu0 %v1109
    %v1145 = vpop.f32.mrb[0].mxu0
    %v1146 = vadd.f32 0.0, %v1145
    %v1147 = vpop.f32.mrb[0].mxu0
    %v1148 = vadd.f32 0.0, %v1147
    %v1149 = vpop.f32.mrb[0].mxu0
    %v1150 = vpop.f32.mrb[0].mxu0
    %1151 = vdwg.mxu0
    %v1152 = vadd.f32 %v1148, %v47
    %v1153 = vadd.f32 %v1152, %v1066
    %v1154 = vxor.u32 %v1153, 2147483648
    %v1155 = vmul.f32 %v1154, 1.442695
    %v1156 = vpow.pop %v1155
    %v1157 = vadd.f32 %v1156, 1.0
    %v1158 = vrcp.pop %v1157
    %v1159 = vmul.f32 1.0, %v1158
    %v1160 = vmul.f32 %v1159, 2.0
    %v1161 = vsub.f32 %v1160, 1.0
    %v1162 = vmul.f32 %v1159, %v1017
    %1164 = vrot.lane.b32.xlu0 %v1161, 64
    %v1165 = vpop.permute.xlu0 %1164
    %v1167 = vmul.f32 %v1159, %v1165
    %1169 = vrot.lane.b32.xlu0 %v1167, 32
    %v1170 = vpop.permute.xlu0 %1169
    %v1172 = vadd.f32 %v1162, %v1170
    %v1173 = vtanh.pop %v1172
    %1175 = vrot.lane.b32.xlu0 %v1173, 64
    %v1176 = vpop.permute.xlu0 %1175
    %v1178 = vmul.f32 %v1159, %v1176
    %v1179 = vpack.c.bf16 %v1178, %v1178
    %1181 = vrot.lane.b32.xlu0 %v1179, 32
    %v1182 = vpop.permute.xlu0 %1181
    %v1184 = vsel %vm181, %v1182, 0
    %1186 = vmatprep.subr.bf16.mxu0 0
    %1187 = vmatpush1.bf16.msra.mxu0 %v42
    %1188 = vmatprep.subr.bf16.mxu0 0
    %1189 = vmatpush1.bf16.msra.mxu0 %v43
    %1190 = vmatprep.subr.bf16.mxu0 0
    %1191 = vmatpush1.bf16.msra.mxu0 0
    %1192 = vmatprep.subr.bf16.mxu0 0
    %1193 = vmatpush1.bf16.msra.mxu0 0
    %1194 = vmatprep.subr.bf16.mxu0 0
    %1195 = vmatpush1.bf16.msra.mxu0 0
    %1196 = vmatprep.subr.bf16.mxu0 0
    %1197 = vmatpush1.bf16.msra.mxu0 0
    %1198 = vmatprep.subr.bf16.mxu0 0
    %1199 = vmatpush1.bf16.msra.mxu0 0
    %1200 = vmatprep.subr.bf16.mxu0 0
    %1201 = vmatpush1.bf16.msra.mxu0 0
    %1202 = vmatprep.subr.bf16.mxu0 0
    %1203 = vmatpush1.bf16.msra.mxu0 0
    %1204 = vmatprep.subr.bf16.mxu0 0
    %1205 = vmatpush1.bf16.msra.mxu0 0
    %1206 = vmatprep.subr.bf16.mxu0 0
    %1207 = vmatpush1.bf16.msra.mxu0 0
    %1208 = vmatprep.subr.bf16.mxu0 0
    %1209 = vmatpush1.bf16.msra.mxu0 0
    %1210 = vmatprep.subr.bf16.mxu0 0
    %1211 = vmatpush1.bf16.msra.mxu0 0
    %1212 = vmatprep.subr.bf16.mxu0 0
    %1213 = vmatpush1.bf16.msra.mxu0 0
    %1214 = vmatprep.subr.bf16.mxu0 0
    %1215 = vmatpush1.bf16.msra.mxu0 0
    %1216 = vmatprep.subr.bf16.mxu0 0
    %1217 = vmatpush1.bf16.msra.mxu0 0
    %1218 = vmatprep.mubr.bf16.mxu0 0
    %1219 = vmatmul.mubr.bf16.gmra.mrb[0].mxu0 %v1184
    %v1220 = vpop.f32.mrb[0].mxu0
    %v1221 = vadd.f32 0.0, %v1220
    %v1222 = vpop.f32.mrb[0].mxu0
    %v1223 = vpop.f32.mrb[0].mxu0
    %v1224 = vpop.f32.mrb[0].mxu0
    %1225 = vdwg.mxu0
    %v1227 = vrot.slane %v1146, 2
    %v1229 = vadd.f32 %v148, %v1227
    %v1230 = vxor.u32 %v1229, 2147483648
    %v1231 = vmul.f32 %v1230, 1.442695
    %v1232 = vpow.pop %v1231
    %v1233 = vadd.f32 %v1232, 1.0
    %v1234 = vrcp.pop %v1233
    %v1235 = vmul.f32 1.0, %v1234
    %v1236 = vmul.f32 %v1235, 2.0
    %v1237 = vsub.f32 %v1236, 1.0
    %v1239 = vrot.slane %v1096, 6
    %v1241 = vmul.f32 %v1235, %v1239
    %1243 = vrot.lane.b32.xlu0 %v1237, 64
    %v1244 = vpop.permute.xlu0 %1243
    %v1246 = vmul.f32 %v1235, %v1244
    %1248 = vrot.lane.b32.xlu0 %v1246, 32
    %v1249 = vpop.permute.xlu0 %1248
    %v1251 = vadd.f32 %v1241, %v1249
    %v1252 = vtanh.pop %v1251
    %1254 = vrot.lane.b32.xlu0 %v1252, 64
    %v1255 = vpop.permute.xlu0 %1254
    %v1257 = vmul.f32 %v1235, %v1255
    %v1258 = vpack.c.bf16 %v1257, %v1257
    %v1260 = vrot.slane %v1258, 3
    %1261 = vrot.lane.b32.xlu0 %v1260, 32
    %v1262 = vpop.permute.xlu0 %1261
    %v1264 = vsel %vm181, %v1262, 0
    %1266 = vmatprep.subr.bf16.mxu0 %v35
    %1267 = vmatpush1.bf16.msra.mxu0 %v34
    %1268 = vmatprep.subr.bf16.mxu0 %v37
    %1269 = vmatpush1.bf16.msra.mxu0 %v36
    %1270 = vmatprep.subr.bf16.mxu0 0
    %1271 = vmatpush1.bf16.msra.mxu0 0
    %1272 = vmatprep.subr.bf16.mxu0 0
    %1273 = vmatpush1.bf16.msra.mxu0 0
    %1274 = vmatprep.subr.bf16.mxu0 0
    %1275 = vmatpush1.bf16.msra.mxu0 0
    %1276 = vmatprep.subr.bf16.mxu0 0
    %1277 = vmatpush1.bf16.msra.mxu0 0
    %1278 = vmatprep.subr.bf16.mxu0 0
    %1279 = vmatpush1.bf16.msra.mxu0 0
    %1280 = vmatprep.subr.bf16.mxu0 0
    %1281 = vmatpush1.bf16.msra.mxu0 0
    %1282 = vmatprep.subr.bf16.mxu0 0
    %1283 = vmatpush1.bf16.msra.mxu0 0
    %1284 = vmatprep.subr.bf16.mxu0 0
    %1285 = vmatpush1.bf16.msra.mxu0 0
    %1286 = vmatprep.subr.bf16.mxu0 0
    %1287 = vmatpush1.bf16.msra.mxu0 0
    %1288 = vmatprep.subr.bf16.mxu0 0
    %1289 = vmatpush1.bf16.msra.mxu0 0
    %1290 = vmatprep.subr.bf16.mxu0 0
    %1291 = vmatpush1.bf16.msra.mxu0 0
    %1292 = vmatprep.subr.bf16.mxu0 0
    %1293 = vmatpush1.bf16.msra.mxu0 0
    %1294 = vmatprep.subr.bf16.mxu0 0
    %1295 = vmatpush1.bf16.msra.mxu0 0
    %1296 = vmatprep.subr.bf16.mxu0 0
    %1297 = vmatpush1.bf16.msra.mxu0 0
    %1298 = vmatprep.mubr.bf16.mxu0 0
    %1299 = vmatmul.mubr.bf16.gmra.mrb[0].mxu0 %v1264
    %v1300 = vpop.f32.mrb[0].mxu0
    %v1301 = vpop.f32.mrb[0].mxu0
    %v1302 = vadd.f32 0.0, %v1301
    %v1303 = vpop.f32.mrb[0].mxu0
    %v1304 = vpop.f32.mrb[0].mxu0
    %1305 = vdwg.mxu0
    %v1306 = vadd.f32 %v1302, %v47
    %v1307 = vadd.f32 %v1306, %v1221
    %v1308 = vxor.u32 %v1307, 2147483648
    %v1309 = vmul.f32 %v1308, 1.442695
    %v1310 = vpow.pop %v1309
    %v1311 = vadd.f32 %v1310, 1.0
    %v1312 = vrcp.pop %v1311
    %v1313 = vmul.f32 1.0, %v1312
    %v1314 = vmul.f32 %v1313, 2.0
    %v1315 = vsub.f32 %v1314, 1.0
    %v1316 = vmul.f32 %v1313, %v1172
    %1318 = vrot.lane.b32.xlu0 %v1315, 64
    %v1319 = vpop.permute.xlu0 %1318
    %v1321 = vmul.f32 %v1313, %v1319
    %1323 = vrot.lane.b32.xlu0 %v1321, 32
    %v1324 = vpop.permute.xlu0 %1323
    %v1326 = vadd.f32 %v1316, %v1324
    %v1327 = vtanh.pop %v1326
    %1329 = vrot.lane.b32.xlu0 %v1327, 64
    %v1330 = vpop.permute.xlu0 %1329
    %v1332 = vmul.f32 %v1313, %v1330
    %v1333 = vpack.c.bf16 %v1332, %v1332
    %1335 = vrot.lane.b32.xlu0 %v1333, 32
    %v1336 = vpop.permute.xlu0 %1335
    %v1338 = vsel %vm181, %v1336, 0
    %1340 = vmatprep.subr.bf16.mxu0 0
    %1341 = vmatpush1.bf16.msra.mxu0 %v52
    %1342 = vmatprep.subr.bf16.mxu0 0
    %1343 = vmatpush1.bf16.msra.mxu0 %v53
    %1344 = vmatprep.subr.bf16.mxu0 0
    %1345 = vmatpush1.bf16.msra.mxu0 0
    %1346 = vmatprep.subr.bf16.mxu0 0
    %1347 = vmatpush1.bf16.msra.mxu0 0
    %1348 = vmatprep.subr.bf16.mxu0 0
    %1349 = vmatpush1.bf16.msra.mxu0 0
    %1350 = vmatprep.subr.bf16.mxu0 0
    %1351 = vmatpush1.bf16.msra.mxu0 0
    %1352 = vmatprep.subr.bf16.mxu0 0
    %1353 = vmatpush1.bf16.msra.mxu0 0
    %1354 = vmatprep.subr.bf16.mxu0 0
    %1355 = vmatpush1.bf16.msra.mxu0 0
    %1356 = vmatprep.subr.bf16.mxu0 0
    %1357 = vmatpush1.bf16.msra.mxu0 0
    %1358 = vmatprep.subr.bf16.mxu0 0
    %1359 = vmatpush1.bf16.msra.mxu0 0
    %1360 = vmatprep.subr.bf16.mxu0 0
    %1361 = vmatpush1.bf16.msra.mxu0 0
    %1362 = vmatprep.subr.bf16.mxu0 0
    %1363 = vmatpush1.bf16.msra.mxu0 0
    %1364 = vmatprep.subr.bf16.mxu0 0
    %1365 = vmatpush1.bf16.msra.mxu0 0
    %1366 = vmatprep.subr.bf16.mxu0 0
    %1367 = vmatpush1.bf16.msra.mxu0 0
    %1368 = vmatprep.subr.bf16.mxu0 0
    %1369 = vmatpush1.bf16.msra.mxu0 0
    %1370 = vmatprep.subr.bf16.mxu0 0
    %1371 = vmatpush1.bf16.msra.mxu0 0
    %1372 = vmatprep.mubr.bf16.mxu0 0
    %1373 = vmatmul.mubr.bf16.gmra.mrb[0].mxu0 %v1338
    %v1374 = vpop.f32.mrb[0].mxu0
    %v1375 = vadd.f32 %v54, %v1374
    %v1376 = vpop.f32.mrb[0].mxu0
    %v1377 = vpop.f32.mrb[0].mxu0
    %v1378 = vpop.f32.mrb[0].mxu0
    %1379 = vdwg.mxu0
    %vm1380 = vcmask 1024
    %1381 = vst.msk [vmem:[%s2] sm:$0x3] %vm1380, %v1375
    // Predicated region
    $region14: #{tpu_custom_call.1} parent=1 // pred_check
      _
    $region15: #{tpu_custom_call.1} parent=1 // pred_check_branch
      %1383 = sbr.rel (0) target = $region17
    $region16: #{tpu_custom_call.1} parent=1 // pred_region
      _
    $region17: #{tpu_custom_call.1} parent=1 // pred_fallthru
      _
    // Predicated region
    $region18: #{tpu_custom_call.1} parent=1 // pred_check
      _
    $region19: #{tpu_custom_call.1} parent=1 // pred_check_branch
      %1385 = sbr.rel (0) target = $region21
    $region20: #{tpu_custom_call.1} parent=1 // pred_region
      _
    $region21: #{tpu_custom_call.1} parent=1 // pred_fallthru
      _
    %1386 = vsyncpa [#allocation3], 1

</llo_original>
